<compile_context>
chip_gen: v7x
topology: tpu7x:2x2x1
jax: 0.10.0
libtpu: 0.0.40
codegen_flags: <defaults>
</compile_context>

<pallas_src>
import functools

import jax
import jax.numpy as jnp
from jax import lax
from jax.experimental import pallas as pl
from jax.experimental.pallas import tpu as pltpu

LN_EPS = 1e-5  # torch.nn.LayerNorm default


# ---------------------------------------------------------------------------
# In-kernel helpers (traced inside the Pallas kernel body)
# ---------------------------------------------------------------------------
def _layer_norm(x, g, b):
    # x: (M, C) f32; g, b: (1, C).  Single-pass statistics: var = E[x^2]-mu^2.
    mu = jnp.mean(x, axis=-1, keepdims=True)
    ms = jnp.mean(x * x, axis=-1, keepdims=True)
    var = jnp.maximum(ms - mu * mu, 0.0)
    return (x - mu) * lax.rsqrt(var + LN_EPS) * g + b


def _conv3_fused(h, w, bias, row_shift):
    """Fused 3-tap conv along T on the flattened (T*H, Cin) block.

    h: (M, Cin) in compute dtype, rows ordered (t, h) with t major.
    w: (3*Cin, Cout) packed weight [tap t-1 | tap t | tap t+1] along rows.
    bias: (1, Cout) f32.  row_shift = H (rows separating t and t-1).
    Returns (M, Cout) f32.
    """
    m = h.shape[0]
    z = jnp.zeros((row_shift, h.shape[1]), h.dtype)
    h_prev = jnp.concatenate([z, h[: m - row_shift, :]], axis=0)   # x[t-1]
    h_next = jnp.concatenate([h[row_shift:, :], z], axis=0)        # x[t+1]
    slab = jnp.concatenate([h_prev, h, h_next], axis=-1)           # (M, 3*Cin)
    y = jnp.dot(slab, w, preferred_element_type=jnp.float32)
    return y + bias


# ---------------------------------------------------------------------------
# Pallas kernel: LN -> Conv -> ReLU -> LN -> Conv -> ReLU -> LN -> Conv
# ---------------------------------------------------------------------------
def _adapter_kernel(x_ref,
                    g0_ref, b0_ref, w1_ref, c1_ref,
                    g1_ref, b1_ref, w2_ref, c2_ref,
                    g2_ref, b2_ref, w3_ref, c3_ref,
                    o_ref, *, row_shift, compute_dtype):
    x = x_ref[0].astype(jnp.float32)                                # (M, C)
    h = _layer_norm(x, g0_ref[...], b0_ref[...]).astype(compute_dtype)
    h = jnp.maximum(_conv3_fused(h, w1_ref[...], c1_ref[...], row_shift), 0.0)
    h = _layer_norm(h, g1_ref[...], b1_ref[...]).astype(compute_dtype)
    h = jnp.maximum(_conv3_fused(h, w2_ref[...], c2_ref[...], row_shift), 0.0)
    h = _layer_norm(h, g2_ref[...], b2_ref[...]).astype(compute_dtype)
    h = _conv3_fused(h, w3_ref[...], c3_ref[...], row_shift)
    o_ref[0, :, :] = h.astype(o_ref.dtype)


# ---------------------------------------------------------------------------
# Wrapper (glue: free reshape + weight packing, no HBM transposes)
# ---------------------------------------------------------------------------
def _vmem_limit_bytes():
    try:
        cap = int(pltpu.get_tpu_info().vmem_capacity_bytes)
    except Exception:                       # conservative fallback
        cap = 128 * 1024 * 1024
    # Half of physical VMEM, never below the 32 MiB default scoped limit.
    return max(32 * 1024 * 1024, cap // 2)


def light_conv_adapter_head(x, params, target_model="hubert",
                            compute_dtype=jnp.bfloat16):
    """x: [B, T, H, C] -> [B, T, H, C] (adapter path of LightConvAdapterHead)."""
    B, T, H, C = x.shape
    hid = params["conv1_w"].shape[0]
    M = T * H

    # Free contiguous view: [B, T, H, C] -> [B, T*H, C]; rows are (t, h) with
    # t major, so the t+-1 neighbour at the same h is exactly +-H rows away.
    rows = x.reshape(B, M, C)

    def pack_w(w):  # torch Conv2d weight (out, in, 1, 3) -> (3*in, out)
        taps = jnp.transpose(w[:, :, 0, :], (2, 1, 0))              # (3, in, out)
        return taps.reshape(3 * w.shape[1], w.shape[0]).astype(compute_dtype)

    f32 = jnp.float32
    args = (
        rows,
        params["ln0_g"].reshape(1, C).astype(f32),
        params["ln0_b"].reshape(1, C).astype(f32),
        pack_w(params["conv1_w"]), params["conv1_b"].reshape(1, hid).astype(f32),
        params["ln1_g"].reshape(1, hid).astype(f32),
        params["ln1_b"].reshape(1, hid).astype(f32),
        pack_w(params["conv2_w"]), params["conv2_b"].reshape(1, hid).astype(f32),
        params["ln2_g"].reshape(1, hid).astype(f32),
        params["ln2_b"].reshape(1, hid).astype(f32),
        pack_w(params["conv3_w"]), params["conv3_b"].reshape(1, C).astype(f32),
    )

    def full(shape):  # grid-invariant operand (weights / LN params / biases)
        return pl.BlockSpec(shape, lambda b, _n=len(shape): (0,) * _n)

    in_specs = [
        pl.BlockSpec((1, M, C), lambda b: (b, 0, 0)),
        full((1, C)), full((1, C)),
        full((3 * C, hid)), full((1, hid)),
        full((1, hid)), full((1, hid)),
        full((3 * hid, hid)), full((1, hid)),
        full((1, hid)), full((1, hid)),
        full((3 * hid, C)), full((1, C)),
    ]

    out_rows = pl.pallas_call(
        functools.partial(_adapter_kernel, row_shift=H,
                          compute_dtype=compute_dtype),
        out_shape=jax.ShapeDtypeStruct((B, M, C), x.dtype),
        grid_spec=pltpu.PrefetchScalarGridSpec(
            num_scalar_prefetch=0,
            grid=(B,),
            in_specs=in_specs,
            out_specs=pl.BlockSpec((1, M, C), lambda b: (b, 0, 0)),
        ),
        compiler_params=pltpu.CompilerParams(
            dimension_semantics=("parallel",),
            vmem_limit_bytes=_vmem_limit_bytes()),
    )(*args)

    out = out_rows.reshape(B, T, H, C)

    if target_model == "ast":
        # TODO(synk): length_adjuster (LayerNorm + Conv2d(1,3) + AdaptiveAvgPool2d
        # to (1214, C)) is only active for target_model=='ast'; not implemented.
        raise NotImplementedError("length_adjuster path not implemented")
    return out


# ---------------------------------------------------------------------------
# Pure-JAX reference (independent of the kernel) for verification
# ---------------------------------------------------------------------------
def reference_forward(x, params, compute_dtype=jnp.float32):
    def ln(h, g, b):
        mu = h.mean(-1, keepdims=True)
        var = ((h - mu) ** 2).mean(-1, keepdims=True)
        return (h - mu) / jnp.sqrt(var + LN_EPS) * g + b

    def conv(h, w, b):  # h: [B, T, H, C]; w: torch layout (out, in, 1, 3)
        nchw = jnp.transpose(h, (0, 3, 2, 1)).astype(compute_dtype)   # b c h t
        y = lax.conv_general_dilated(
            nchw, w.astype(compute_dtype), window_strides=(1, 1),
            padding=((0, 0), (1, 1)),
            dimension_numbers=("NCHW", "OIHW", "NCHW"),
            preferred_element_type=jnp.float32)
        y = y + b[None, :, None, None]
        return jnp.transpose(y, (0, 3, 2, 1))                         # b t h c

    h = ln(x.astype(jnp.float32), params["ln0_g"], params["ln0_b"])
    h = jax.nn.relu(conv(h, params["conv1_w"], params["conv1_b"]))
    h = ln(h, params["ln1_g"], params["ln1_b"])
    h = jax.nn.relu(conv(h, params["conv2_w"], params["conv2_b"]))
    h = ln(h, params["ln2_g"], params["ln2_b"])
    h = conv(h, params["conv3_w"], params["conv3_b"])
    return h


if __name__ == "__main__":
    # Small shapes consistent with the module: x is [B, T, H, C].
    B, T, H, C = 2, 8, 4, 32
    hidden_size_factor = 1.0
    hid = int(C * hidden_size_factor)

    key = jax.random.PRNGKey(0)
    ks = jax.random.split(key, 11)
    params = {
        "ln0_g": 1.0 + 0.1 * jax.random.normal(ks[0], (C,), jnp.float32),
        "ln0_b": 0.1 * jax.random.normal(ks[1], (C,), jnp.float32),
        "conv1_w": 0.1 * jax.random.normal(ks[2], (hid, C, 1, 3), jnp.float32),
        "conv1_b": 0.1 * jax.random.normal(ks[3], (hid,), jnp.float32),
        "ln1_g": 1.0 + 0.1 * jax.random.normal(ks[4], (hid,), jnp.float32),
        "ln1_b": 0.1 * jax.random.normal(ks[5], (hid,), jnp.float32),
        "conv2_w": 0.1 * jax.random.normal(ks[6], (hid, hid, 1, 3), jnp.float32),
        "conv2_b": 0.1 * jax.random.normal(ks[7], (hid,), jnp.float32),
        "ln2_g": jnp.ones((hid,), jnp.float32),
        "ln2_b": jnp.zeros((hid,), jnp.float32),
        "conv3_w": 0.1 * jax.random.normal(ks[8], (C, hid, 1, 3), jnp.float32),
        "conv3_b": 0.1 * jax.random.normal(ks[9], (C,), jnp.float32),
    }
    x = jax.random.normal(ks[10], (B, T, H, C), jnp.float32)

    # Exactness check: f32 MXU path against the independent f32 reference.
    ref32 = jax.block_until_ready(reference_forward(x, params, jnp.float32))
    out32 = jax.block_until_ready(
        light_conv_adapter_head(x, params, compute_dtype=jnp.float32))
    assert out32.shape == (B, T, H, C), out32.shape
    assert jnp.allclose(out32, ref32, atol=1e-4, rtol=1e-4), \
        float(jnp.max(jnp.abs(out32 - ref32)))

    # Optimized bf16-fed-MXU path against a reference fed bf16 at the same
    # points (matmul inputs only; LN / bias math stays f32 in both).
    refbf = jax.block_until_ready(reference_forward(x, params, jnp.bfloat16))
    outbf = jax.block_until_ready(
        light_conv_adapter_head(x, params, compute_dtype=jnp.bfloat16))
    assert outbf.shape == (B, T, H, C), outbf.shape
    assert jnp.allclose(outbf, refbf, atol=2e-2, rtol=2e-2), \
        float(jnp.max(jnp.abs(outbf - refbf)))

    print("KERNEL_OK")
</pallas_src>

<mosaic_0001>
module attributes {stable_mosaic.version = 11 : i64} {
  func.func @_adapter_kernel(%arg0: i32, %arg1: memref<1x32x32xf32, #tpu.memory_space<vmem>>, %arg2: memref<1x32xf32, #tpu.memory_space<vmem>>, %arg3: memref<1x32xf32, #tpu.memory_space<vmem>>, %arg4: memref<96x32xf32, #tpu.memory_space<vmem>>, %arg5: memref<1x32xf32, #tpu.memory_space<vmem>>, %arg6: memref<1x32xf32, #tpu.memory_space<vmem>>, %arg7: memref<1x32xf32, #tpu.memory_space<vmem>>, %arg8: memref<96x32xf32, #tpu.memory_space<vmem>>, %arg9: memref<1x32xf32, #tpu.memory_space<vmem>>, %arg10: memref<1x32xf32, #tpu.memory_space<vmem>>, %arg11: memref<1x32xf32, #tpu.memory_space<vmem>>, %arg12: memref<96x32xf32, #tpu.memory_space<vmem>>, %arg13: memref<1x32xf32, #tpu.memory_space<vmem>>, %arg14: memref<1x32x32xf32, #tpu.memory_space<vmem>>) attributes {dimension_semantics = [#tpu.dimension_semantics<parallel>], iteration_bounds = array<i64: 2>, scalar_prefetch = 0 : i64, scratch_operands = 0 : i64, tpu.core_type = #tpu.core_type<tc>, window_params = [{transform_indices = @transform_0, window_bounds = array<i64: 1, 32, 32>}, {pipeline_mode = #tpu.pipeline_mode<synchronous>, transform_indices = @transform_1, window_bounds = array<i64: 1, 32>}, {pipeline_mode = #tpu.pipeline_mode<synchronous>, transform_indices = @transform_2, window_bounds = array<i64: 1, 32>}, {pipeline_mode = #tpu.pipeline_mode<synchronous>, transform_indices = @transform_3, window_bounds = array<i64: 96, 32>}, {pipeline_mode = #tpu.pipeline_mode<synchronous>, transform_indices = @transform_4, window_bounds = array<i64: 1, 32>}, {pipeline_mode = #tpu.pipeline_mode<synchronous>, transform_indices = @transform_5, window_bounds = array<i64: 1, 32>}, {pipeline_mode = #tpu.pipeline_mode<synchronous>, transform_indices = @transform_6, window_bounds = array<i64: 1, 32>}, {pipeline_mode = #tpu.pipeline_mode<synchronous>, transform_indices = @transform_7, window_bounds = array<i64: 96, 32>}, {pipeline_mode = #tpu.pipeline_mode<synchronous>, transform_indices = @transform_8, window_bounds = array<i64: 1, 32>}, {pipeline_mode = #tpu.pipeline_mode<synchronous>, transform_indices = @transform_9, window_bounds = array<i64: 1, 32>}, {pipeline_mode = #tpu.pipeline_mode<synchronous>, transform_indices = @transform_10, window_bounds = array<i64: 1, 32>}, {pipeline_mode = #tpu.pipeline_mode<synchronous>, transform_indices = @transform_11, window_bounds = array<i64: 96, 32>}, {pipeline_mode = #tpu.pipeline_mode<synchronous>, transform_indices = @transform_12, window_bounds = array<i64: 1, 32>}, {transform_indices = @transform_13, window_bounds = array<i64: 1, 32, 32>}]} {
    %c0 = arith.constant 0 : index
    %c0_0 = arith.constant 0 : index
    %c0_1 = arith.constant 0 : index
    %0 = vector.load %arg1[%c0, %c0_0, %c0_1] : memref<1x32x32xf32, #tpu.memory_space<vmem>>, vector<1x32x32xf32>
    %1 = vector.shape_cast %0 : vector<1x32x32xf32> to vector<32x32xf32>
    %c0_2 = arith.constant 0 : index
    %c0_3 = arith.constant 0 : index
    %2 = vector.load %arg2[%c0_2, %c0_3] : memref<1x32xf32, #tpu.memory_space<vmem>>, vector<1x32xf32>
    %c0_4 = arith.constant 0 : index
    %c0_5 = arith.constant 0 : index
    %3 = vector.load %arg3[%c0_4, %c0_5] : memref<1x32xf32, #tpu.memory_space<vmem>>, vector<1x32xf32>
    %cst = arith.constant dense<0.000000e+00> : vector<32xf32>
    %4 = vector.multi_reduction <add>, %1, %cst [1] : vector<32x32xf32> to vector<32xf32>
    %5 = vector.shape_cast %4 : vector<32xf32> to vector<32x1xf32>
    %cst_6 = arith.constant 3.200000e+01 : f32
    %6 = vector.broadcast %cst_6 : f32 to vector<32x1xf32>
    %7 = arith.divf %5, %6 : vector<32x1xf32>
    %8 = arith.mulf %1, %1 : vector<32x32xf32>
    %cst_7 = arith.constant dense<0.000000e+00> : vector<32xf32>
    %9 = vector.multi_reduction <add>, %8, %cst_7 [1] : vector<32x32xf32> to vector<32xf32>
    %10 = vector.shape_cast %9 : vector<32xf32> to vector<32x1xf32>
    %cst_8 = arith.constant 3.200000e+01 : f32
    %11 = vector.broadcast %cst_8 : f32 to vector<32x1xf32>
    %12 = arith.divf %10, %11 : vector<32x1xf32>
    %13 = arith.mulf %7, %7 : vector<32x1xf32>
    %14 = arith.subf %12, %13 : vector<32x1xf32>
    %cst_9 = arith.constant 0.000000e+00 : f32
    %15 = vector.broadcast %cst_9 : f32 to vector<32x1xf32>
    %16 = arith.maximumf %14, %15 : vector<32x1xf32>
    %17 = vector.broadcast %7 : vector<32x1xf32> to vector<32x32xf32>
    %18 = arith.subf %1, %17 : vector<32x32xf32>
    %cst_10 = arith.constant 9.99999974E-6 : f32
    %19 = vector.broadcast %cst_10 : f32 to vector<32x1xf32>
    %20 = arith.addf %16, %19 : vector<32x1xf32>
    %21 = math.rsqrt %20 : vector<32x1xf32>
    %22 = vector.broadcast %21 : vector<32x1xf32> to vector<32x32xf32>
    %23 = arith.mulf %18, %22 : vector<32x32xf32>
    %24 = vector.broadcast %2 : vector<1x32xf32> to vector<32x32xf32>
    %25 = arith.mulf %23, %24 : vector<32x32xf32>
    %26 = vector.broadcast %3 : vector<1x32xf32> to vector<32x32xf32>
    %27 = arith.addf %25, %26 : vector<32x32xf32>
    %c0_11 = arith.constant 0 : index
    %c0_12 = arith.constant 0 : index
    %28 = vector.load %arg4[%c0_11, %c0_12] : memref<96x32xf32, #tpu.memory_space<vmem>>, vector<96x32xf32>
    %c0_13 = arith.constant 0 : index
    %c0_14 = arith.constant 0 : index
    %29 = vector.load %arg5[%c0_13, %c0_14] : memref<1x32xf32, #tpu.memory_space<vmem>>, vector<1x32xf32>
    %cst_15 = arith.constant 0.000000e+00 : f32
    %30 = vector.broadcast %cst_15 : f32 to vector<4x32xf32>
    %31 = vector.extract_strided_slice %27 {offsets = [0, 0], sizes = [28, 32], strides = [1, 1]} : vector<32x32xf32> to vector<28x32xf32>
    %32 = tpu.concatenate %30, %31 in 0 : vector<4x32xf32>, vector<28x32xf32> -> vector<32x32xf32>
    %33 = vector.extract_strided_slice %27 {offsets = [4, 0], sizes = [28, 32], strides = [1, 1]} : vector<32x32xf32> to vector<28x32xf32>
    %34 = tpu.concatenate %33, %30 in 0 : vector<28x32xf32>, vector<4x32xf32> -> vector<32x32xf32>
    %35 = tpu.concatenate %32, %27, %34 in 1 : vector<32x32xf32>, vector<32x32xf32>, vector<32x32xf32> -> vector<32x96xf32>
    %cst_16 = arith.constant dense<0.000000e+00> : vector<32x32xf32>
    %36 = tpu.matmul %35, %28, %cst_16 {dimension_numbers = #tpu.dot_dimension_numbers<[1], [0], [0], [1], [0, 0, 1, 1], [], []>} : vector<32x96xf32>, vector<96x32xf32>, vector<32x32xf32> -> vector<32x32xf32>
    %37 = vector.broadcast %29 : vector<1x32xf32> to vector<32x32xf32>
    %38 = arith.addf %36, %37 : vector<32x32xf32>
    %cst_17 = arith.constant 0.000000e+00 : f32
    %39 = vector.broadcast %cst_17 : f32 to vector<32x32xf32>
    %40 = arith.maximumf %38, %39 : vector<32x32xf32>
    %c0_18 = arith.constant 0 : index
    %c0_19 = arith.constant 0 : index
    %41 = vector.load %arg6[%c0_18, %c0_19] : memref<1x32xf32, #tpu.memory_space<vmem>>, vector<1x32xf32>
    %c0_20 = arith.constant 0 : index
    %c0_21 = arith.constant 0 : index
    %42 = vector.load %arg7[%c0_20, %c0_21] : memref<1x32xf32, #tpu.memory_space<vmem>>, vector<1x32xf32>
    %cst_22 = arith.constant dense<0.000000e+00> : vector<32xf32>
    %43 = vector.multi_reduction <add>, %40, %cst_22 [1] : vector<32x32xf32> to vector<32xf32>
    %44 = vector.shape_cast %43 : vector<32xf32> to vector<32x1xf32>
    %cst_23 = arith.constant 3.200000e+01 : f32
    %45 = vector.broadcast %cst_23 : f32 to vector<32x1xf32>
    %46 = arith.divf %44, %45 : vector<32x1xf32>
    %47 = arith.mulf %40, %40 : vector<32x32xf32>
    %cst_24 = arith.constant dense<0.000000e+00> : vector<32xf32>
    %48 = vector.multi_reduction <add>, %47, %cst_24 [1] : vector<32x32xf32> to vector<32xf32>
    %49 = vector.shape_cast %48 : vector<32xf32> to vector<32x1xf32>
    %cst_25 = arith.constant 3.200000e+01 : f32
    %50 = vector.broadcast %cst_25 : f32 to vector<32x1xf32>
    %51 = arith.divf %49, %50 : vector<32x1xf32>
    %52 = arith.mulf %46, %46 : vector<32x1xf32>
    %53 = arith.subf %51, %52 : vector<32x1xf32>
    %cst_26 = arith.constant 0.000000e+00 : f32
    %54 = vector.broadcast %cst_26 : f32 to vector<32x1xf32>
    %55 = arith.maximumf %53, %54 : vector<32x1xf32>
    %56 = vector.broadcast %46 : vector<32x1xf32> to vector<32x32xf32>
    %57 = arith.subf %40, %56 : vector<32x32xf32>
    %cst_27 = arith.constant 9.99999974E-6 : f32
    %58 = vector.broadcast %cst_27 : f32 to vector<32x1xf32>
    %59 = arith.addf %55, %58 : vector<32x1xf32>
    %60 = math.rsqrt %59 : vector<32x1xf32>
    %61 = vector.broadcast %60 : vector<32x1xf32> to vector<32x32xf32>
    %62 = arith.mulf %57, %61 : vector<32x32xf32>
    %63 = vector.broadcast %41 : vector<1x32xf32> to vector<32x32xf32>
    %64 = arith.mulf %62, %63 : vector<32x32xf32>
    %65 = vector.broadcast %42 : vector<1x32xf32> to vector<32x32xf32>
    %66 = arith.addf %64, %65 : vector<32x32xf32>
    %c0_28 = arith.constant 0 : index
    %c0_29 = arith.constant 0 : index
    %67 = vector.load %arg8[%c0_28, %c0_29] : memref<96x32xf32, #tpu.memory_space<vmem>>, vector<96x32xf32>
    %c0_30 = arith.constant 0 : index
    %c0_31 = arith.constant 0 : index
    %68 = vector.load %arg9[%c0_30, %c0_31] : memref<1x32xf32, #tpu.memory_space<vmem>>, vector<1x32xf32>
    %cst_32 = arith.constant 0.000000e+00 : f32
    %69 = vector.broadcast %cst_32 : f32 to vector<4x32xf32>
    %70 = vector.extract_strided_slice %66 {offsets = [0, 0], sizes = [28, 32], strides = [1, 1]} : vector<32x32xf32> to vector<28x32xf32>
    %71 = tpu.concatenate %69, %70 in 0 : vector<4x32xf32>, vector<28x32xf32> -> vector<32x32xf32>
    %72 = vector.extract_strided_slice %66 {offsets = [4, 0], sizes = [28, 32], strides = [1, 1]} : vector<32x32xf32> to vector<28x32xf32>
    %73 = tpu.concatenate %72, %69 in 0 : vector<28x32xf32>, vector<4x32xf32> -> vector<32x32xf32>
    %74 = tpu.concatenate %71, %66, %73 in 1 : vector<32x32xf32>, vector<32x32xf32>, vector<32x32xf32> -> vector<32x96xf32>
    %cst_33 = arith.constant dense<0.000000e+00> : vector<32x32xf32>
    %75 = tpu.matmul %74, %67, %cst_33 {dimension_numbers = #tpu.dot_dimension_numbers<[1], [0], [0], [1], [0, 0, 1, 1], [], []>} : vector<32x96xf32>, vector<96x32xf32>, vector<32x32xf32> -> vector<32x32xf32>
    %76 = vector.broadcast %68 : vector<1x32xf32> to vector<32x32xf32>
    %77 = arith.addf %75, %76 : vector<32x32xf32>
    %cst_34 = arith.constant 0.000000e+00 : f32
    %78 = vector.broadcast %cst_34 : f32 to vector<32x32xf32>
    %79 = arith.maximumf %77, %78 : vector<32x32xf32>
    %c0_35 = arith.constant 0 : index
    %c0_36 = arith.constant 0 : index
    %80 = vector.load %arg10[%c0_35, %c0_36] : memref<1x32xf32, #tpu.memory_space<vmem>>, vector<1x32xf32>
    %c0_37 = arith.constant 0 : index
    %c0_38 = arith.constant 0 : index
    %81 = vector.load %arg11[%c0_37, %c0_38] : memref<1x32xf32, #tpu.memory_space<vmem>>, vector<1x32xf32>
    %cst_39 = arith.constant dense<0.000000e+00> : vector<32xf32>
    %82 = vector.multi_reduction <add>, %79, %cst_39 [1] : vector<32x32xf32> to vector<32xf32>
    %83 = vector.shape_cast %82 : vector<32xf32> to vector<32x1xf32>
    %cst_40 = arith.constant 3.200000e+01 : f32
    %84 = vector.broadcast %cst_40 : f32 to vector<32x1xf32>
    %85 = arith.divf %83, %84 : vector<32x1xf32>
    %86 = arith.mulf %79, %79 : vector<32x32xf32>
    %cst_41 = arith.constant dense<0.000000e+00> : vector<32xf32>
    %87 = vector.multi_reduction <add>, %86, %cst_41 [1] : vector<32x32xf32> to vector<32xf32>
    %88 = vector.shape_cast %87 : vector<32xf32> to vector<32x1xf32>
    %cst_42 = arith.constant 3.200000e+01 : f32
    %89 = vector.broadcast %cst_42 : f32 to vector<32x1xf32>
    %90 = arith.divf %88, %89 : vector<32x1xf32>
    %91 = arith.mulf %85, %85 : vector<32x1xf32>
    %92 = arith.subf %90, %91 : vector<32x1xf32>
    %cst_43 = arith.constant 0.000000e+00 : f32
    %93 = vector.broadcast %cst_43 : f32 to vector<32x1xf32>
    %94 = arith.maximumf %92, %93 : vector<32x1xf32>
    %95 = vector.broadcast %85 : vector<32x1xf32> to vector<32x32xf32>
    %96 = arith.subf %79, %95 : vector<32x32xf32>
    %cst_44 = arith.constant 9.99999974E-6 : f32
    %97 = vector.broadcast %cst_44 : f32 to vector<32x1xf32>
    %98 = arith.addf %94, %97 : vector<32x1xf32>
    %99 = math.rsqrt %98 : vector<32x1xf32>
    %100 = vector.broadcast %99 : vector<32x1xf32> to vector<32x32xf32>
    %101 = arith.mulf %96, %100 : vector<32x32xf32>
    %102 = vector.broadcast %80 : vector<1x32xf32> to vector<32x32xf32>
    %103 = arith.mulf %101, %102 : vector<32x32xf32>
    %104 = vector.broadcast %81 : vector<1x32xf32> to vector<32x32xf32>
    %105 = arith.addf %103, %104 : vector<32x32xf32>
    %c0_45 = arith.constant 0 : index
    %c0_46 = arith.constant 0 : index
    %106 = vector.load %arg12[%c0_45, %c0_46] : memref<96x32xf32, #tpu.memory_space<vmem>>, vector<96x32xf32>
    %c0_47 = arith.constant 0 : index
    %c0_48 = arith.constant 0 : index
    %107 = vector.load %arg13[%c0_47, %c0_48] : memref<1x32xf32, #tpu.memory_space<vmem>>, vector<1x32xf32>
    %cst_49 = arith.constant 0.000000e+00 : f32
    %108 = vector.broadcast %cst_49 : f32 to vector<4x32xf32>
    %109 = vector.extract_strided_slice %105 {offsets = [0, 0], sizes = [28, 32], strides = [1, 1]} : vector<32x32xf32> to vector<28x32xf32>
    %110 = tpu.concatenate %108, %109 in 0 : vector<4x32xf32>, vector<28x32xf32> -> vector<32x32xf32>
    %111 = vector.extract_strided_slice %105 {offsets = [4, 0], sizes = [28, 32], strides = [1, 1]} : vector<32x32xf32> to vector<28x32xf32>
    %112 = tpu.concatenate %111, %108 in 0 : vector<28x32xf32>, vector<4x32xf32> -> vector<32x32xf32>
    %113 = tpu.concatenate %110, %105, %112 in 1 : vector<32x32xf32>, vector<32x32xf32>, vector<32x32xf32> -> vector<32x96xf32>
    %cst_50 = arith.constant dense<0.000000e+00> : vector<32x32xf32>
    %114 = tpu.matmul %113, %106, %cst_50 {dimension_numbers = #tpu.dot_dimension_numbers<[1], [0], [0], [1], [0, 0, 1, 1], [], []>} : vector<32x96xf32>, vector<96x32xf32>, vector<32x32xf32> -> vector<32x32xf32>
    %115 = vector.broadcast %107 : vector<1x32xf32> to vector<32x32xf32>
    %116 = arith.addf %114, %115 : vector<32x32xf32>
    %c0_51 = arith.constant 0 : index
    %c0_52 = arith.constant 0 : index
    %c0_53 = arith.constant 0 : index
    %117 = vector.load %arg14[%c0_51, %c0_52, %c0_53] : memref<1x32x32xf32, #tpu.memory_space<vmem>>, vector<1x32x32xf32>
    %118 = vector.shape_cast %117 : vector<1x32x32xf32> to vector<32x32xf32>
    %119 = vector.shape_cast %116 : vector<32x32xf32> to vector<1x32x32xf32>
    tpu.vector_store %arg14[%c0_51, %c0_52, %c0_53], %119 {strides = array<i32>} : memref<1x32x32xf32, #tpu.memory_space<vmem>>, vector<1x32x32xf32>,
    return
  }
  func.func @transform_0(%arg0: i32) -> (i32, i32, i32) {
    %c0_i32 = arith.constant 0 : i32
    %c0_i32_0 = arith.constant 0 : i32
    %c0_i32_1 = arith.constant 0 : i32
    return %arg0, %c0_i32, %c0_i32_0 : i32, i32, i32
  }
  func.func @transform_1(%arg0: i32) -> (i32, i32) {
    %c0_i32 = arith.constant 0 : i32
    %c0_i32_0 = arith.constant 0 : i32
    %c0_i32_1 = arith.constant 0 : i32
    return %c0_i32, %c0_i32_0 : i32, i32
  }
  func.func @transform_2(%arg0: i32) -> (i32, i32) {
    %c0_i32 = arith.constant 0 : i32
    %c0_i32_0 = arith.constant 0 : i32
    %c0_i32_1 = arith.constant 0 : i32
    return %c0_i32, %c0_i32_0 : i32, i32
  }
  func.func @transform_3(%arg0: i32) -> (i32, i32) {
    %c0_i32 = arith.constant 0 : i32
    %c0_i32_0 = arith.constant 0 : i32
    %c0_i32_1 = arith.constant 0 : i32
    return %c0_i32, %c0_i32_0 : i32, i32
  }
  func.func @transform_4(%arg0: i32) -> (i32, i32) {
    %c0_i32 = arith.constant 0 : i32
    %c0_i32_0 = arith.constant 0 : i32
    %c0_i32_1 = arith.constant 0 : i32
    return %c0_i32, %c0_i32_0 : i32, i32
  }
  func.func @transform_5(%arg0: i32) -> (i32, i32) {
    %c0_i32 = arith.constant 0 : i32
    %c0_i32_0 = arith.constant 0 : i32
    %c0_i32_1 = arith.constant 0 : i32
    return %c0_i32, %c0_i32_0 : i32, i32
  }
  func.func @transform_6(%arg0: i32) -> (i32, i32) {
    %c0_i32 = arith.constant 0 : i32
    %c0_i32_0 = arith.constant 0 : i32
    %c0_i32_1 = arith.constant 0 : i32
    return %c0_i32, %c0_i32_0 : i32, i32
  }
  func.func @transform_7(%arg0: i32) -> (i32, i32) {
    %c0_i32 = arith.constant 0 : i32
    %c0_i32_0 = arith.constant 0 : i32
    %c0_i32_1 = arith.constant 0 : i32
    return %c0_i32, %c0_i32_0 : i32, i32
  }
  func.func @transform_8(%arg0: i32) -> (i32, i32) {
    %c0_i32 = arith.constant 0 : i32
    %c0_i32_0 = arith.constant 0 : i32
    %c0_i32_1 = arith.constant 0 : i32
    return %c0_i32, %c0_i32_0 : i32, i32
  }
  func.func @transform_9(%arg0: i32) -> (i32, i32) {
    %c0_i32 = arith.constant 0 : i32
    %c0_i32_0 = arith.constant 0 : i32
    %c0_i32_1 = arith.constant 0 : i32
    return %c0_i32, %c0_i32_0 : i32, i32
  }
  func.func @transform_10(%arg0: i32) -> (i32, i32) {
    %c0_i32 = arith.constant 0 : i32
    %c0_i32_0 = arith.constant 0 : i32
    %c0_i32_1 = arith.constant 0 : i32
    return %c0_i32, %c0_i32_0 : i32, i32
  }
  func.func @transform_11(%arg0: i32) -> (i32, i32) {
    %c0_i32 = arith.constant 0 : i32
    %c0_i32_0 = arith.constant 0 : i32
    %c0_i32_1 = arith.constant 0 : i32
    return %c0_i32, %c0_i32_0 : i32, i32
  }
  func.func @transform_12(%arg0: i32) -> (i32, i32) {
    %c0_i32 = arith.constant 0 : i32
    %c0_i32_0 = arith.constant 0 : i32
    %c0_i32_1 = arith.constant 0 : i32
    return %c0_i32, %c0_i32_0 : i32, i32
  }
  func.func @transform_13(%arg0: i32) -> (i32, i32, i32) {
    %c0_i32 = arith.constant 0 : i32
    %c0_i32_0 = arith.constant 0 : i32
    %c0_i32_1 = arith.constant 0 : i32
    return %arg0, %c0_i32, %c0_i32_0 : i32, i32, i32
  }
}

</mosaic_0001>

<llo_original>
// kernel: tpu_custom_call.1
$region0: #{tpu_custom_call.1}
  #allocation0 [shape = 'u32[]', space=smem, size = 0x4, offset = 0x4, fixed_abs, tag = 'smem constant byte address 0x4 - core index']
  #allocation1 [shape = 'u32[144,128]{1,0:T(1,128)}', space=vmem, size = 0x12000, scoped, tag = 'internal scratch']
  %s0 = inlined_call_operand.hbm [shape: f32[2,32,32], index: 0, kind: input, shape index: {}]
  %s1 = inlined_call_operand.hbm [shape: f32[1,32], index: 1, kind: input, shape index: {}]
  %s2 = inlined_call_operand.hbm [shape: f32[1,32], index: 2, kind: input, shape index: {}]
  %s3 = inlined_call_operand.hbm [shape: f32[96,32], index: 3, kind: input, shape index: {}]
  %s4 = inlined_call_operand.hbm [shape: f32[1,32], index: 4, kind: input, shape index: {}]
  %s5 = inlined_call_operand.hbm [shape: f32[1,32], index: 5, kind: input, shape index: {}]
  %s6 = inlined_call_operand.hbm [shape: f32[1,32], index: 6, kind: input, shape index: {}]
  %s7 = inlined_call_operand.hbm [shape: f32[96,32], index: 7, kind: input, shape index: {}]
  %s8 = inlined_call_operand.hbm [shape: f32[1,32], index: 8, kind: input, shape index: {}]
  %s9 = inlined_call_operand.hbm [shape: f32[1,32], index: 9, kind: input, shape index: {}]
  %s10 = inlined_call_operand.hbm [shape: f32[1,32], index: 10, kind: input, shape index: {}]
  %s11 = inlined_call_operand.hbm [shape: f32[96,32], index: 11, kind: input, shape index: {}]
  %s12 = inlined_call_operand.hbm [shape: f32[1,32], index: 12, kind: input, shape index: {}]
  %s13 = inlined_call_operand.hbm [shape: f32[2,32,32], index: 13, kind: output, shape index: {}]
  %s14 = sld [smem:[#allocation0]]
  $region137: #{tpu_custom_call.1} parent=0
    _
  %s16 = ssub.s32 1, %s14
  %s17 = scalar_select 0, %s16, %s14
  $region1: #{tpu_custom_call.1} parent=0
    #allocation2 [shape = 'u8[32768]{0}', space=vmem, size = 0x8000, scoped, tag = 'input window, operand 0']
    #allocation3 [shape = 's32[2]{0}', space=sflag, size = 0x8, scoped, tag = 'scoped memory for tpu_custom_call.1']
    #allocation4 [shape = 's32[2]{0}', space=sflag, size = 0x8, scoped, tag = 'scoped memory for tpu_custom_call.1']
    #allocation5 [shape = 'u8[512]{0}', space=vmem, size = 0x400, scoped, tag = 'input window, operand 1, single buffered']
    #allocation6 [shape = 's32[1]{0}', space=sflag, size = 0x4, scoped, tag = 'scoped memory for tpu_custom_call.1']
    #allocation7 [shape = 'u8[512]{0}', space=vmem, size = 0x400, scoped, tag = 'input window, operand 2, single buffered']
    #allocation8 [shape = 'u8[49152]{0}', space=vmem, size = 0xc000, scoped, tag = 'input window, operand 3, single buffered']
    #allocation9 [shape = 's32[1]{0}', space=sflag, size = 0x4, scoped, tag = 'scoped memory for tpu_custom_call.1']
    #allocation10 [shape = 'u8[512]{0}', space=vmem, size = 0x400, scoped, tag = 'input window, operand 4, single buffered']
    #allocation11 [shape = 'u8[512]{0}', space=vmem, size = 0x400, scoped, tag = 'input window, operand 5, single buffered']
    #allocation12 [shape = 's32[1]{0}', space=sflag, size = 0x4, scoped, tag = 'scoped memory for tpu_custom_call.1']
    #allocation13 [shape = 'u8[512]{0}', space=vmem, size = 0x400, scoped, tag = 'input window, operand 6, single buffered']
    #allocation14 [shape = 'u8[49152]{0}', space=vmem, size = 0xc000, scoped, tag = 'input window, operand 7, single buffered']
    #allocation15 [shape = 's32[1]{0}', space=sflag, size = 0x4, scoped, tag = 'scoped memory for tpu_custom_call.1']
    #allocation16 [shape = 'u8[512]{0}', space=vmem, size = 0x400, scoped, tag = 'input window, operand 8, single buffered']
    #allocation17 [shape = 'u8[512]{0}', space=vmem, size = 0x400, scoped, tag = 'input window, operand 9, single buffered']
    #allocation18 [shape = 's32[1]{0}', space=sflag, size = 0x4, scoped, tag = 'scoped memory for tpu_custom_call.1']
    #allocation19 [shape = 'u8[512]{0}', space=vmem, size = 0x400, scoped, tag = 'input window, operand 10, single buffered']
    #allocation20 [shape = 'u8[49152]{0}', space=vmem, size = 0xc000, scoped, tag = 'input window, operand 11, single buffered']
    #allocation21 [shape = 's32[1]{0}', space=sflag, size = 0x4, scoped, tag = 'scoped memory for tpu_custom_call.1']
    #allocation22 [shape = 'u8[512]{0}', space=vmem, size = 0x400, scoped, tag = 'input window, operand 12, single buffered']
    #allocation23 [shape = 'u8[32768]{0}', space=vmem, size = 0x8000, scoped, tag = 'output window, operand 0']
    %18 = vsyncpa [#allocation3], 0
    %s19 = scalar_lea.sflag [#allocation3], 1
    %20 = vsyncpa %s19, 0
    %21 = vsyncpa [#allocation6], 0
    %22 = vsyncpa [#allocation9], 0
    %23 = vsyncpa [#allocation12], 0
    %24 = vsyncpa [#allocation15], 0
    %25 = vsyncpa [#allocation18], 0
    %26 = vsyncpa [#allocation21], 0
    %27 = vsyncpa [#allocation4], 0
    %s28 = scalar_lea.sflag [#allocation4], 1
    %29 = vsyncpa %s28, 0
    loop: start=0, step=1, limit=4
    $region2: #{tpu_custom_call.1} parent=1 // loop_pre_header
      _
    $region3: #{tpu_custom_call.1} parent=1 // loop_header
      %s31 = sphi 0, %s35
      %p32 = scmp.ge.s32.totalorder %s31, 4
      %s41 = sphi 0, %s43
      %s44 = sphi 0, %s41
      %s45 = sphi 0, %s44
      %s61 = sphi 0, %s45
      %s65 = sphi 0, %s65
      %s67 = sphi 0, %s65
      %s68 = sphi 0, %s67
      %s82 = sphi 0, %s68
      %s86 = sphi 0, %s86
      %s88 = sphi 0, %s86
      %s89 = sphi 0, %s88
      %s103 = sphi 0, %s89
      %s107 = sphi 0, %s107
      %s109 = sphi 0, %s107
      %s110 = sphi 0, %s109
      %s124 = sphi 0, %s110
      %s128 = sphi 0, %s128
      %s130 = sphi 0, %s128
      %s131 = sphi 0, %s130
      %s145 = sphi 0, %s131
      %s149 = sphi 0, %s149
      %s151 = sphi 0, %s149
      %s152 = sphi 0, %s151
      %s166 = sphi 0, %s152
      %s170 = sphi 0, %s170
      %s172 = sphi 0, %s170
      %s173 = sphi 0, %s172
      %s187 = sphi 0, %s173
      %s191 = sphi 0, %s191
      %s193 = sphi 0, %s191
      %s194 = sphi 0, %s193
      %s208 = sphi 0, %s194
      %s212 = sphi 0, %s212
      %s214 = sphi 0, %s212
      %s215 = sphi 0, %s214
      %s229 = sphi 0, %s215
      %s233 = sphi 0, %s233
      %s235 = sphi 0, %s233
      %s236 = sphi 0, %s235
      %s250 = sphi 0, %s236
      %s254 = sphi 0, %s254
      %s256 = sphi 0, %s254
      %s257 = sphi 0, %s256
      %s271 = sphi 0, %s257
      %s275 = sphi 0, %s275
      %s277 = sphi 0, %s275
      %s278 = sphi 0, %s277
      %s292 = sphi 0, %s278
      %s296 = sphi 0, %s296
      %s298 = sphi 0, %s296
      %s299 = sphi 0, %s298
      %s313 = sphi 0, %s299
      %s319 = sphi 0, %s321
      %s322 = sphi 0, %s319
      %s323 = sphi 0, %s322
      %s339 = sphi 0, %s323
    $region4: #{tpu_custom_call.1} parent=1 // loop_header_branch
      %34 = sbr.rel (%p32) target = $region8
    $region5: #{tpu_custom_call.1} parent=1 // loop_body
      %s36 = ssub.s32 %s31, 1
      %s37 = ssub.s32 %s31, 2
      %s38 = sadd.s32 %s31, 1
      %s39 = ssub.s32 %s31, %s38
      %p40 = scmp.eq.s32.totalorder %s39, 0
      %s42 = sadd.s32 %s41, 1
      %s43 = scalar_select %p40, %s41, %s42
      %p46 = pneg %p40
      %p47 = scmp.eq.s32.totalorder %s31, 1
      %p48 = por %p46, %p47
      %p49 = scmp.ne.s32.totalorder %s41, %s44
      %p50 = scmp.eq.s32.totalorder %s31, 0
      %p51 = por %p49, %p50
      %p52 = scmp.ne.s32.totalorder %s41, %s44
      %p53 = scmp.eq.s32.totalorder %s36, 1
      %p54 = por %p52, %p53
      %p55 = scmp.ne.s32.totalorder %s44, %s45
      %p56 = scmp.eq.s32.totalorder %s36, 0
      %p57 = por %p55, %p56
      %p58 = scmp.ne.s32.totalorder %s44, %s45
      %p59 = scmp.eq.s32.totalorder %s37, 1
      %p60 = por %p58, %p59
      %p62 = scmp.ne.s32.totalorder %s45, %s61
      %p63 = scmp.eq.s32.totalorder %s37, 0
      %p64 = por %p62, %p63
      %s66 = sadd.s32 %s65, 1
      %p69 = scmp.eq.s32.totalorder %s31, 1
      %p70 = scmp.ne.s32.totalorder %s65, %s67
      %p71 = scmp.eq.s32.totalorder %s31, 0
      %p72 = por %p70, %p71
      %p73 = scmp.ne.s32.totalorder %s65, %s67
      %p74 = scmp.eq.s32.totalorder %s36, 1
      %p75 = por %p73, %p74
      %p76 = scmp.ne.s32.totalorder %s67, %s68
      %p77 = scmp.eq.s32.totalorder %s36, 0
      %p78 = por %p76, %p77
      %p79 = scmp.ne.s32.totalorder %s67, %s68
      %p80 = scmp.eq.s32.totalorder %s37, 1
      %p81 = por %p79, %p80
      %p83 = scmp.ne.s32.totalorder %s68, %s82
      %p84 = scmp.eq.s32.totalorder %s37, 0
      %p85 = por %p83, %p84
      %s87 = sadd.s32 %s86, 1
      %p90 = scmp.eq.s32.totalorder %s31, 1
      %p91 = scmp.ne.s32.totalorder %s86, %s88
      %p92 = scmp.eq.s32.totalorder %s31, 0
      %p93 = por %p91, %p92
      %p94 = scmp.ne.s32.totalorder %s86, %s88
      %p95 = scmp.eq.s32.totalorder %s36, 1
      %p96 = por %p94, %p95
      %p97 = scmp.ne.s32.totalorder %s88, %s89
      %p98 = scmp.eq.s32.totalorder %s36, 0
      %p99 = por %p97, %p98
      %p100 = scmp.ne.s32.totalorder %s88, %s89
      %p101 = scmp.eq.s32.totalorder %s37, 1
      %p102 = por %p100, %p101
      %p104 = scmp.ne.s32.totalorder %s89, %s103
      %p105 = scmp.eq.s32.totalorder %s37, 0
      %p106 = por %p104, %p105
      %s108 = sadd.s32 %s107, 1
      %p111 = scmp.eq.s32.totalorder %s31, 1
      %p112 = scmp.ne.s32.totalorder %s107, %s109
      %p113 = scmp.eq.s32.totalorder %s31, 0
      %p114 = por %p112, %p113
      %p115 = scmp.ne.s32.totalorder %s107, %s109
      %p116 = scmp.eq.s32.totalorder %s36, 1
      %p117 = por %p115, %p116
      %p118 = scmp.ne.s32.totalorder %s109, %s110
      %p119 = scmp.eq.s32.totalorder %s36, 0
      %p120 = por %p118, %p119
      %p121 = scmp.ne.s32.totalorder %s109, %s110
      %p122 = scmp.eq.s32.totalorder %s37, 1
      %p123 = por %p121, %p122
      %p125 = scmp.ne.s32.totalorder %s110, %s124
      %p126 = scmp.eq.s32.totalorder %s37, 0
      %p127 = por %p125, %p126
      %s129 = sadd.s32 %s128, 1
      %p132 = scmp.eq.s32.totalorder %s31, 1
      %p133 = scmp.ne.s32.totalorder %s128, %s130
      %p134 = scmp.eq.s32.totalorder %s31, 0
      %p135 = por %p133, %p134
      %p136 = scmp.ne.s32.totalorder %s128, %s130
      %p137 = scmp.eq.s32.totalorder %s36, 1
      %p138 = por %p136, %p137
      %p139 = scmp.ne.s32.totalorder %s130, %s131
      %p140 = scmp.eq.s32.totalorder %s36, 0
      %p141 = por %p139, %p140
      %p142 = scmp.ne.s32.totalorder %s130, %s131
      %p143 = scmp.eq.s32.totalorder %s37, 1
      %p144 = por %p142, %p143
      %p146 = scmp.ne.s32.totalorder %s131, %s145
      %p147 = scmp.eq.s32.totalorder %s37, 0
      %p148 = por %p146, %p147
      %s150 = sadd.s32 %s149, 1
      %p153 = scmp.eq.s32.totalorder %s31, 1
      %p154 = scmp.ne.s32.totalorder %s149, %s151
      %p155 = scmp.eq.s32.totalorder %s31, 0
      %p156 = por %p154, %p155
      %p157 = scmp.ne.s32.totalorder %s149, %s151
      %p158 = scmp.eq.s32.totalorder %s36, 1
      %p159 = por %p157, %p158
      %p160 = scmp.ne.s32.totalorder %s151, %s152
      %p161 = scmp.eq.s32.totalorder %s36, 0
      %p162 = por %p160, %p161
      %p163 = scmp.ne.s32.totalorder %s151, %s152
      %p164 = scmp.eq.s32.totalorder %s37, 1
      %p165 = por %p163, %p164
      %p167 = scmp.ne.s32.totalorder %s152, %s166
      %p168 = scmp.eq.s32.totalorder %s37, 0
      %p169 = por %p167, %p168
      %s171 = sadd.s32 %s170, 1
      %p174 = scmp.eq.s32.totalorder %s31, 1
      %p175 = scmp.ne.s32.totalorder %s170, %s172
      %p176 = scmp.eq.s32.totalorder %s31, 0
      %p177 = por %p175, %p176
      %p178 = scmp.ne.s32.totalorder %s170, %s172
      %p179 = scmp.eq.s32.totalorder %s36, 1
      %p180 = por %p178, %p179
      %p181 = scmp.ne.s32.totalorder %s172, %s173
      %p182 = scmp.eq.s32.totalorder %s36, 0
      %p183 = por %p181, %p182
      %p184 = scmp.ne.s32.totalorder %s172, %s173
      %p185 = scmp.eq.s32.totalorder %s37, 1
      %p186 = por %p184, %p185
      %p188 = scmp.ne.s32.totalorder %s173, %s187
      %p189 = scmp.eq.s32.totalorder %s37, 0
      %p190 = por %p188, %p189
      %s192 = sadd.s32 %s191, 1
      %p195 = scmp.eq.s32.totalorder %s31, 1
      %p196 = scmp.ne.s32.totalorder %s191, %s193
      %p197 = scmp.eq.s32.totalorder %s31, 0
      %p198 = por %p196, %p197
      %p199 = scmp.ne.s32.totalorder %s191, %s193
      %p200 = scmp.eq.s32.totalorder %s36, 1
      %p201 = por %p199, %p200
      %p202 = scmp.ne.s32.totalorder %s193, %s194
      %p203 = scmp.eq.s32.totalorder %s36, 0
      %p204 = por %p202, %p203
      %p205 = scmp.ne.s32.totalorder %s193, %s194
      %p206 = scmp.eq.s32.totalorder %s37, 1
      %p207 = por %p205, %p206
      %p209 = scmp.ne.s32.totalorder %s194, %s208
      %p210 = scmp.eq.s32.totalorder %s37, 0
      %p211 = por %p209, %p210
      %s213 = sadd.s32 %s212, 1
      %p216 = scmp.eq.s32.totalorder %s31, 1
      %p217 = scmp.ne.s32.totalorder %s212, %s214
      %p218 = scmp.eq.s32.totalorder %s31, 0
      %p219 = por %p217, %p218
      %p220 = scmp.ne.s32.totalorder %s212, %s214
      %p221 = scmp.eq.s32.totalorder %s36, 1
      %p222 = por %p220, %p221
      %p223 = scmp.ne.s32.totalorder %s214, %s215
      %p224 = scmp.eq.s32.totalorder %s36, 0
      %p225 = por %p223, %p224
      %p226 = scmp.ne.s32.totalorder %s214, %s215
      %p227 = scmp.eq.s32.totalorder %s37, 1
      %p228 = por %p226, %p227
      %p230 = scmp.ne.s32.totalorder %s215, %s229
      %p231 = scmp.eq.s32.totalorder %s37, 0
      %p232 = por %p230, %p231
      %s234 = sadd.s32 %s233, 1
      %p237 = scmp.eq.s32.totalorder %s31, 1
      %p238 = scmp.ne.s32.totalorder %s233, %s235
      %p239 = scmp.eq.s32.totalorder %s31, 0
      %p240 = por %p238, %p239
      %p241 = scmp.ne.s32.totalorder %s233, %s235
      %p242 = scmp.eq.s32.totalorder %s36, 1
      %p243 = por %p241, %p242
      %p244 = scmp.ne.s32.totalorder %s235, %s236
      %p245 = scmp.eq.s32.totalorder %s36, 0
      %p246 = por %p244, %p245
      %p247 = scmp.ne.s32.totalorder %s235, %s236
      %p248 = scmp.eq.s32.totalorder %s37, 1
      %p249 = por %p247, %p248
      %p251 = scmp.ne.s32.totalorder %s236, %s250
      %p252 = scmp.eq.s32.totalorder %s37, 0
      %p253 = por %p251, %p252
      %s255 = sadd.s32 %s254, 1
      %p258 = scmp.eq.s32.totalorder %s31, 1
      %p259 = scmp.ne.s32.totalorder %s254, %s256
      %p260 = scmp.eq.s32.totalorder %s31, 0
      %p261 = por %p259, %p260
      %p262 = scmp.ne.s32.totalorder %s254, %s256
      %p263 = scmp.eq.s32.totalorder %s36, 1
      %p264 = por %p262, %p263
      %p265 = scmp.ne.s32.totalorder %s256, %s257
      %p266 = scmp.eq.s32.totalorder %s36, 0
      %p267 = por %p265, %p266
      %p268 = scmp.ne.s32.totalorder %s256, %s257
      %p269 = scmp.eq.s32.totalorder %s37, 1
      %p270 = por %p268, %p269
      %p272 = scmp.ne.s32.totalorder %s257, %s271
      %p273 = scmp.eq.s32.totalorder %s37, 0
      %p274 = por %p272, %p273
      %s276 = sadd.s32 %s275, 1
      %p279 = scmp.eq.s32.totalorder %s31, 1
      %p280 = scmp.ne.s32.totalorder %s275, %s277
      %p281 = scmp.eq.s32.totalorder %s31, 0
      %p282 = por %p280, %p281
      %p283 = scmp.ne.s32.totalorder %s275, %s277
      %p284 = scmp.eq.s32.totalorder %s36, 1
      %p285 = por %p283, %p284
      %p286 = scmp.ne.s32.totalorder %s277, %s278
      %p287 = scmp.eq.s32.totalorder %s36, 0
      %p288 = por %p286, %p287
      %p289 = scmp.ne.s32.totalorder %s277, %s278
      %p290 = scmp.eq.s32.totalorder %s37, 1
      %p291 = por %p289, %p290
      %p293 = scmp.ne.s32.totalorder %s278, %s292
      %p294 = scmp.eq.s32.totalorder %s37, 0
      %p295 = por %p293, %p294
      %s297 = sadd.s32 %s296, 1
      %p300 = scmp.eq.s32.totalorder %s31, 1
      %p301 = scmp.ne.s32.totalorder %s296, %s298
      %p302 = scmp.eq.s32.totalorder %s31, 0
      %p303 = por %p301, %p302
      %p304 = scmp.ne.s32.totalorder %s296, %s298
      %p305 = scmp.eq.s32.totalorder %s36, 1
      %p306 = por %p304, %p305
      %p307 = scmp.ne.s32.totalorder %s298, %s299
      %p308 = scmp.eq.s32.totalorder %s36, 0
      %p309 = por %p307, %p308
      %p310 = scmp.ne.s32.totalorder %s298, %s299
      %p311 = scmp.eq.s32.totalorder %s37, 1
      %p312 = por %p310, %p311
      %p314 = scmp.ne.s32.totalorder %s299, %s313
      %p315 = scmp.eq.s32.totalorder %s37, 0
      %p316 = por %p314, %p315
      %s317 = ssub.s32 %s31, %s38
      %p318 = scmp.eq.s32.totalorder %s317, 0
      %s320 = sadd.s32 %s319, 1
      %s321 = scalar_select %p318, %s319, %s320
      %p324 = pneg %p318
      %p325 = scmp.eq.s32.totalorder %s31, 1
      %p326 = por %p324, %p325
      %p327 = scmp.ne.s32.totalorder %s319, %s322
      %p328 = scmp.eq.s32.totalorder %s31, 0
      %p329 = por %p327, %p328
      %p330 = scmp.ne.s32.totalorder %s319, %s322
      %p331 = scmp.eq.s32.totalorder %s36, 1
      %p332 = por %p330, %p331
      %p333 = scmp.ne.s32.totalorder %s322, %s323
      %p334 = scmp.eq.s32.totalorder %s36, 0
      %p335 = por %p333, %p334
      %p336 = scmp.ne.s32.totalorder %s322, %s323
      %p337 = scmp.eq.s32.totalorder %s37, 1
      %p338 = por %p336, %p337
      %p340 = scmp.ne.s32.totalorder %s323, %s339
      %p341 = scmp.eq.s32.totalorder %s37, 0
      %p342 = por %p340, %p341
      %p343 = scmp.le.s32.totalorder 1, %s31
      %p344 = scmp.lt.s32.totalorder %s31, 3
      %p345 = pnand %p343, %p344
      %p346 = pneg %p345
      // Predicated region
      $region9: #{tpu_custom_call.1} parent=5 // pred_check
        _
      $region10: #{tpu_custom_call.1} parent=5 // pred_check_branch
        %348 = sbr.rel (%p345) target = $region12
      $region11: #{tpu_custom_call.1} parent=5 // pred_region
        %s349 = ssub.s32 %s31, 1
        // Predicated region
        $region13: #{tpu_custom_call.1} parent=11 // pred_check
          %p350 = pneg %p78
        $region14: #{tpu_custom_call.1} parent=11 // pred_check_branch
          %352 = sbr.rel (%p350) target = $region16
        $region15: #{tpu_custom_call.1} parent=11 // pred_region
          %s354 = ssub.s32 16, 16
          %355 = vsyncadd [#allocation6], %s354
          %s357 = sshll.u32 [#allocation5], 4
          %s358 = int_to_ptr.vmem [resolvable:$true] %s357
          %360 = dma.hbm_to_vmem [thread:$0]  %s1, 16, %s358, [#allocation6]
        $region16: #{tpu_custom_call.1} parent=11 // pred_fallthru
          _
        // Predicated region
        $region17: #{tpu_custom_call.1} parent=11 // pred_check
          %p361 = pneg %p99
        $region18: #{tpu_custom_call.1} parent=11 // pred_check_branch
          %363 = sbr.rel (%p361) target = $region20
        $region19: #{tpu_custom_call.1} parent=11 // pred_region
          %s365 = ssub.s32 16, 16
          %366 = vsyncadd [#allocation6], %s365
          %s368 = sshll.u32 [#allocation7], 4
          %s369 = int_to_ptr.vmem [resolvable:$true] %s368
          %371 = dma.hbm_to_vmem [thread:$0]  %s2, 16, %s369, [#allocation6]
        $region20: #{tpu_custom_call.1} parent=11 // pred_fallthru
          _
        // Predicated region
        $region21: #{tpu_custom_call.1} parent=11 // pred_check
          %p372 = pneg %p120
        $region22: #{tpu_custom_call.1} parent=11 // pred_check_branch
          %374 = sbr.rel (%p372) target = $region24
        $region23: #{tpu_custom_call.1} parent=11 // pred_region
          %s376 = ssub.s32 1536, 1536
          %377 = vsyncadd [#allocation9], %s376
          %s378 = sshll.u32 [#allocation8], 4
          %s379 = int_to_ptr.vmem [resolvable:$true] %s378
          %384 = dma.hbm_to_vmem [thread:$0]  %s3, 1536, %s379, [#allocation9], 128, 128, 8
        $region24: #{tpu_custom_call.1} parent=11 // pred_fallthru
          _
        // Predicated region
        $region25: #{tpu_custom_call.1} parent=11 // pred_check
          %p385 = pneg %p141
        $region26: #{tpu_custom_call.1} parent=11 // pred_check_branch
          %387 = sbr.rel (%p385) target = $region28
        $region27: #{tpu_custom_call.1} parent=11 // pred_region
          %s389 = ssub.s32 16, 16
          %390 = vsyncadd [#allocation9], %s389
          %s392 = sshll.u32 [#allocation10], 4
          %s393 = int_to_ptr.vmem [resolvable:$true] %s392
          %395 = dma.hbm_to_vmem [thread:$0]  %s4, 16, %s393, [#allocation9]
        $region28: #{tpu_custom_call.1} parent=11 // pred_fallthru
          _
        // Predicated region
        $region29: #{tpu_custom_call.1} parent=11 // pred_check
          %p396 = pneg %p162
        $region30: #{tpu_custom_call.1} parent=11 // pred_check_branch
          %398 = sbr.rel (%p396) target = $region32
        $region31: #{tpu_custom_call.1} parent=11 // pred_region
          %s400 = ssub.s32 16, 16
          %401 = vsyncadd [#allocation12], %s400
          %s403 = sshll.u32 [#allocation11], 4
          %s404 = int_to_ptr.vmem [resolvable:$true] %s403
          %406 = dma.hbm_to_vmem [thread:$0]  %s5, 16, %s404, [#allocation12]
        $region32: #{tpu_custom_call.1} parent=11 // pred_fallthru
          _
        // Predicated region
        $region33: #{tpu_custom_call.1} parent=11 // pred_check
          %p407 = pneg %p183
        $region34: #{tpu_custom_call.1} parent=11 // pred_check_branch
          %409 = sbr.rel (%p407) target = $region36
        $region35: #{tpu_custom_call.1} parent=11 // pred_region
          %s411 = ssub.s32 16, 16
          %412 = vsyncadd [#allocation12], %s411
          %s414 = sshll.u32 [#allocation13], 4
          %s415 = int_to_ptr.vmem [resolvable:$true] %s414
          %417 = dma.hbm_to_vmem [thread:$0]  %s6, 16, %s415, [#allocation12]
        $region36: #{tpu_custom_call.1} parent=11 // pred_fallthru
          _
        // Predicated region
        $region37: #{tpu_custom_call.1} parent=11 // pred_check
          %p418 = pneg %p204
        $region38: #{tpu_custom_call.1} parent=11 // pred_check_branch
          %420 = sbr.rel (%p418) target = $region40
        $region39: #{tpu_custom_call.1} parent=11 // pred_region
          %s422 = ssub.s32 1536, 1536
          %423 = vsyncadd [#allocation15], %s422
          %s424 = sshll.u32 [#allocation14], 4
          %s425 = int_to_ptr.vmem [resolvable:$true] %s424
          %430 = dma.hbm_to_vmem [thread:$0]  %s7, 1536, %s425, [#allocation15], 128, 128, 8
        $region40: #{tpu_custom_call.1} parent=11 // pred_fallthru
          _
        // Predicated region
        $region41: #{tpu_custom_call.1} parent=11 // pred_check
          %p431 = pneg %p225
        $region42: #{tpu_custom_call.1} parent=11 // pred_check_branch
          %433 = sbr.rel (%p431) target = $region44
        $region43: #{tpu_custom_call.1} parent=11 // pred_region
          %s435 = ssub.s32 16, 16
          %436 = vsyncadd [#allocation15], %s435
          %s438 = sshll.u32 [#allocation16], 4
          %s439 = int_to_ptr.vmem [resolvable:$true] %s438
          %441 = dma.hbm_to_vmem [thread:$0]  %s8, 16, %s439, [#allocation15]
        $region44: #{tpu_custom_call.1} parent=11 // pred_fallthru
          _
        // Predicated region
        $region45: #{tpu_custom_call.1} parent=11 // pred_check
          %p442 = pneg %p246
        $region46: #{tpu_custom_call.1} parent=11 // pred_check_branch
          %444 = sbr.rel (%p442) target = $region48
        $region47: #{tpu_custom_call.1} parent=11 // pred_region
          %s446 = ssub.s32 16, 16
          %447 = vsyncadd [#allocation18], %s446
          %s449 = sshll.u32 [#allocation17], 4
          %s450 = int_to_ptr.vmem [resolvable:$true] %s449
          %452 = dma.hbm_to_vmem [thread:$0]  %s9, 16, %s450, [#allocation18]
        $region48: #{tpu_custom_call.1} parent=11 // pred_fallthru
          _
        // Predicated region
        $region49: #{tpu_custom_call.1} parent=11 // pred_check
          %p453 = pneg %p267
        $region50: #{tpu_custom_call.1} parent=11 // pred_check_branch
          %455 = sbr.rel (%p453) target = $region52
        $region51: #{tpu_custom_call.1} parent=11 // pred_region
          %s457 = ssub.s32 16, 16
          %458 = vsyncadd [#allocation18], %s457
          %s460 = sshll.u32 [#allocation19], 4
          %s461 = int_to_ptr.vmem [resolvable:$true] %s460
          %463 = dma.hbm_to_vmem [thread:$0]  %s10, 16, %s461, [#allocation18]
        $region52: #{tpu_custom_call.1} parent=11 // pred_fallthru
          _
        // Predicated region
        $region53: #{tpu_custom_call.1} parent=11 // pred_check
          %p464 = pneg %p288
        $region54: #{tpu_custom_call.1} parent=11 // pred_check_branch
          %466 = sbr.rel (%p464) target = $region56
        $region55: #{tpu_custom_call.1} parent=11 // pred_region
          %s468 = ssub.s32 1536, 1536
          %469 = vsyncadd [#allocation21], %s468
          %s470 = sshll.u32 [#allocation20], 4
          %s471 = int_to_ptr.vmem [resolvable:$true] %s470
          %476 = dma.hbm_to_vmem [thread:$0]  %s11, 1536, %s471, [#allocation21], 128, 128, 8
        $region56: #{tpu_custom_call.1} parent=11 // pred_fallthru
          _
        // Predicated region
        $region57: #{tpu_custom_call.1} parent=11 // pred_check
          %p477 = pneg %p309
        $region58: #{tpu_custom_call.1} parent=11 // pred_check_branch
          %479 = sbr.rel (%p477) target = $region60
        $region59: #{tpu_custom_call.1} parent=11 // pred_region
          %s481 = ssub.s32 16, 16
          %482 = vsyncadd [#allocation21], %s481
          %s484 = sshll.u32 [#allocation22], 4
          %s485 = int_to_ptr.vmem [resolvable:$true] %s484
          %487 = dma.hbm_to_vmem [thread:$0]  %s12, 16, %s485, [#allocation21]
        $region60: #{tpu_custom_call.1} parent=11 // pred_fallthru
          _
      $region12: #{tpu_custom_call.1} parent=5 // pred_fallthru
        _
      %p488 = scmp.lt.s32.totalorder %s31, 2
      // Predicated region
      $region61: #{tpu_custom_call.1} parent=5 // pred_check
        %p489 = pneg %p488
      $region62: #{tpu_custom_call.1} parent=5 // pred_check_branch
        %491 = sbr.rel (%p489) target = $region64
      $region63: #{tpu_custom_call.1} parent=5 // pred_region
        // Predicated region
        $region65: #{tpu_custom_call.1} parent=63 // pred_check
          %p492 = pneg %p51
        $region66: #{tpu_custom_call.1} parent=63 // pred_check_branch
          %494 = sbr.rel (%p492) target = $region68
        $region67: #{tpu_custom_call.1} parent=63 // pred_region
          %s495 = sand.u32 %s41, 1
          %s496 = scalar_lea.sflag [#allocation3], %s495
          %s497 = sand.u32 %s41, 1
          %s498 = smul.addr %s497, 32
          %s499 = scalar_lea.vmem [#allocation2], %s498
          %s501 = ssub.s32 512, 512
          %502 = vsyncadd %s496, %s501
          %s503 = smul.addr %s31, 4
          %s504 = smul.addr %s503, 128
          %s505 = scalar_lea.hbm %s0, %s504
          %s506 = sshll.u32 %s499, 4
          %s507 = int_to_ptr.vmem [resolvable:$true] %s506
          %512 = dma.hbm_to_vmem [thread:$0]  %s505, 512, %s507, %s496, 128, 128, 8
        $region68: #{tpu_custom_call.1} parent=63 // pred_fallthru
          _
      $region64: #{tpu_custom_call.1} parent=5 // pred_fallthru
        _
      %p513 = scmp.le.s32.totalorder 1, %s31
      %p514 = scmp.lt.s32.totalorder %s31, 3
      %p515 = pnand %p513, %p514
      %p516 = pneg %p515
      // Predicated region
      $region69: #{tpu_custom_call.1} parent=5 // pred_check
        _
      $region70: #{tpu_custom_call.1} parent=5 // pred_check_branch
        %518 = sbr.rel (%p515) target = $region72
      $region71: #{tpu_custom_call.1} parent=5 // pred_region
        %s519 = ssub.s32 %s31, 1
        %s520 = sand.u32 %s44, 1
        %s521 = scalar_lea.sflag [#allocation3], %s520
        %s522 = sand.u32 %s44, 1
        %s523 = smul.addr %s522, 32
        %s524 = scalar_lea.vmem [#allocation2], %s523
        // Predicated region
        $region73: #{tpu_custom_call.1} parent=71 // pred_check
          %p525 = pneg %p57
        $region74: #{tpu_custom_call.1} parent=71 // pred_check_branch
          %527 = sbr.rel (%p525) target = $region76
        $region75: #{tpu_custom_call.1} parent=71 // pred_region
          %528 = dma.done %s521, 512
        $region76: #{tpu_custom_call.1} parent=71 // pred_fallthru
          _
        // Predicated region
        $region77: #{tpu_custom_call.1} parent=71 // pred_check
          %p529 = pneg %p78
        $region78: #{tpu_custom_call.1} parent=71 // pred_check_branch
          %531 = sbr.rel (%p529) target = $region80
        $region79: #{tpu_custom_call.1} parent=71 // pred_region
          %532 = dma.done [#allocation6], 16
        $region80: #{tpu_custom_call.1} parent=71 // pred_fallthru
          _
        // Predicated region
        $region81: #{tpu_custom_call.1} parent=71 // pred_check
          %p533 = pneg %p99
        $region82: #{tpu_custom_call.1} parent=71 // pred_check_branch
          %535 = sbr.rel (%p533) target = $region84
        $region83: #{tpu_custom_call.1} parent=71 // pred_region
          %536 = dma.done [#allocation6], 16
        $region84: #{tpu_custom_call.1} parent=71 // pred_fallthru
          _
        // Predicated region
        $region85: #{tpu_custom_call.1} parent=71 // pred_check
          %p537 = pneg %p120
        $region86: #{tpu_custom_call.1} parent=71 // pred_check_branch
          %539 = sbr.rel (%p537) target = $region88
        $region87: #{tpu_custom_call.1} parent=71 // pred_region
          %540 = dma.done [#allocation9], 1536
        $region88: #{tpu_custom_call.1} parent=71 // pred_fallthru
          _
        // Predicated region
        $region89: #{tpu_custom_call.1} parent=71 // pred_check
          %p541 = pneg %p141
        $region90: #{tpu_custom_call.1} parent=71 // pred_check_branch
          %543 = sbr.rel (%p541) target = $region92
        $region91: #{tpu_custom_call.1} parent=71 // pred_region
          %544 = dma.done [#allocation9], 16
        $region92: #{tpu_custom_call.1} parent=71 // pred_fallthru
          _
        // Predicated region
        $region93: #{tpu_custom_call.1} parent=71 // pred_check
          %p545 = pneg %p162
        $region94: #{tpu_custom_call.1} parent=71 // pred_check_branch
          %547 = sbr.rel (%p545) target = $region96
        $region95: #{tpu_custom_call.1} parent=71 // pred_region
          %548 = dma.done [#allocation12], 16
        $region96: #{tpu_custom_call.1} parent=71 // pred_fallthru
          _
        // Predicated region
        $region97: #{tpu_custom_call.1} parent=71 // pred_check
          %p549 = pneg %p183
        $region98: #{tpu_custom_call.1} parent=71 // pred_check_branch
          %551 = sbr.rel (%p549) target = $region100
        $region99: #{tpu_custom_call.1} parent=71 // pred_region
          %552 = dma.done [#allocation12], 16
        $region100: #{tpu_custom_call.1} parent=71 // pred_fallthru
          _
        // Predicated region
        $region101: #{tpu_custom_call.1} parent=71 // pred_check
          %p553 = pneg %p204
        $region102: #{tpu_custom_call.1} parent=71 // pred_check_branch
          %555 = sbr.rel (%p553) target = $region104
        $region103: #{tpu_custom_call.1} parent=71 // pred_region
          %556 = dma.done [#allocation15], 1536
        $region104: #{tpu_custom_call.1} parent=71 // pred_fallthru
          _
        // Predicated region
        $region105: #{tpu_custom_call.1} parent=71 // pred_check
          %p557 = pneg %p225
        $region106: #{tpu_custom_call.1} parent=71 // pred_check_branch
          %559 = sbr.rel (%p557) target = $region108
        $region107: #{tpu_custom_call.1} parent=71 // pred_region
          %560 = dma.done [#allocation15], 16
        $region108: #{tpu_custom_call.1} parent=71 // pred_fallthru
          _
        // Predicated region
        $region109: #{tpu_custom_call.1} parent=71 // pred_check
          %p561 = pneg %p246
        $region110: #{tpu_custom_call.1} parent=71 // pred_check_branch
          %563 = sbr.rel (%p561) target = $region112
        $region111: #{tpu_custom_call.1} parent=71 // pred_region
          %564 = dma.done [#allocation18], 16
        $region112: #{tpu_custom_call.1} parent=71 // pred_fallthru
          _
        // Predicated region
        $region113: #{tpu_custom_call.1} parent=71 // pred_check
          %p565 = pneg %p267
        $region114: #{tpu_custom_call.1} parent=71 // pred_check_branch
          %567 = sbr.rel (%p565) target = $region116
        $region115: #{tpu_custom_call.1} parent=71 // pred_region
          %568 = dma.done [#allocation18], 16
        $region116: #{tpu_custom_call.1} parent=71 // pred_fallthru
          _
        // Predicated region
        $region117: #{tpu_custom_call.1} parent=71 // pred_check
          %p569 = pneg %p288
        $region118: #{tpu_custom_call.1} parent=71 // pred_check_branch
          %571 = sbr.rel (%p569) target = $region120
        $region119: #{tpu_custom_call.1} parent=71 // pred_region
          %572 = dma.done [#allocation21], 1536
        $region120: #{tpu_custom_call.1} parent=71 // pred_fallthru
          _
        // Predicated region
        $region121: #{tpu_custom_call.1} parent=71 // pred_check
          %p573 = pneg %p309
        $region122: #{tpu_custom_call.1} parent=71 // pred_check_branch
          %575 = sbr.rel (%p573) target = $region124
        $region123: #{tpu_custom_call.1} parent=71 // pred_region
          %576 = dma.done [#allocation21], 16
        $region124: #{tpu_custom_call.1} parent=71 // pred_fallthru
          _
        %s577 = sand.u32 %s44, 1
        %s578 = scalar_lea.sflag [#allocation3], %s577
        %s579 = sand.u32 %s44, 1
        %s580 = smul.addr %s579, 32
        %s581 = scalar_lea.vmem [#allocation2], %s580
        %p582 = pneg %p57
        %p583 = pneg %p54
        %p584 = pneg %p78
        %p585 = pneg %p75
        %p586 = pneg %p99
        %p587 = pneg %p96
        %p588 = pneg %p120
        %p589 = pneg %p117
        %p590 = pneg %p141
        %p591 = pneg %p138
        %p592 = pneg %p162
        %p593 = pneg %p159
        %p594 = pneg %p183
        %p595 = pneg %p180
        %p596 = pneg %p204
        %p597 = pneg %p201
        %p598 = pneg %p225
        %p599 = pneg %p222
        %p600 = pneg %p246
        %p601 = pneg %p243
        %p602 = pneg %p267
        %p603 = pneg %p264
        %p604 = pneg %p288
        %p605 = pneg %p285
        %p606 = pneg %p309
        %p607 = pneg %p306
        %p608 = pneg %p335
        %p609 = pneg %p332
        %s610 = sand.u32 %s322, 1
        %s611 = scalar_lea.sflag [#allocation4], %s610
        %s612 = sand.u32 %s322, 1
        %s613 = smul.addr %s612, 32
        %s614 = scalar_lea.vmem [#allocation23], %s613
        %v615 = vld [vmem:[%s524] sm:$0xff]
        %v616 = vld [vmem:[%s524 + $0x8] sm:$0xff]
        %v617 = vld [vmem:[%s524 + $0x10] sm:$0xff]
        %v618 = vld [vmem:[%s524 + $0x18] sm:$0xff]
        %v619 = vld [vmem:[#allocation5] sm:$0x1]
        %v620 = vld [vmem:[#allocation7] sm:$0x1]
        %vm621 = vcmask 261120
        %v622 = vsel %vm621, %v615, 0.0
        %623 = vadd.xlane.f32.xlu0 %v622
        %v624 = vpop.xlane.xlu0 %623
        %v625 = vsel %vm621, %v616, 0.0
        %626 = vadd.xlane.f32.xlu0 %v625
        %v627 = vpop.xlane.xlu0 %626
        %v628 = vsel %vm621, %v617, 0.0
        %629 = vadd.xlane.f32.xlu0 %v628
        %v630 = vpop.xlane.xlu0 %629
        %v631 = vsel %vm621, %v618, 0.0
        %632 = vadd.xlane.f32.xlu0 %v631
        %v633 = vpop.xlane.xlu0 %632
        %v634 = vrcp.pop 32.0
        %v635 = vmul.f32 %v624, %v634
        %v636 = vmul.f32 %v627, %v634
        %v637 = vmul.f32 %v630, %v634
        %v638 = vmul.f32 %v633, %v634
        %v639 = vmul.f32 %v615, %v615
        %v640 = vmul.f32 %v616, %v616
        %v641 = vmul.f32 %v617, %v617
        %v642 = vmul.f32 %v618, %v618
        %v643 = vsel %vm621, %v639, 0.0
        %644 = vadd.xlane.f32.xlu0 %v643
        %v645 = vpop.xlane.xlu0 %644
        %v646 = vsel %vm621, %v640, 0.0
        %647 = vadd.xlane.f32.xlu0 %v646
        %v648 = vpop.xlane.xlu0 %647
        %v649 = vsel %vm621, %v641, 0.0
        %650 = vadd.xlane.f32.xlu0 %v649
        %v651 = vpop.xlane.xlu0 %650
        %v652 = vsel %vm621, %v642, 0.0
        %653 = vadd.xlane.f32.xlu0 %v652
        %v654 = vpop.xlane.xlu0 %653
        %v655 = vmul.f32 %v645, %v634
        %v656 = vmul.f32 %v648, %v634
        %v657 = vmul.f32 %v651, %v634
        %v658 = vmul.f32 %v654, %v634
        %v659 = vmul.f32 %v635, %v635
        %v660 = vmul.f32 %v636, %v636
        %v661 = vmul.f32 %v637, %v637
        %v662 = vmul.f32 %v638, %v638
        %v663 = vsub.f32 %v655, %v659
        %v664 = vsub.f32 %v656, %v660
        %v665 = vsub.f32 %v657, %v661
        %v666 = vsub.f32 %v658, %v662
        %v667 = vmax.f32 %v663, 0.0
        %v668 = vmax.f32 %v664, 0.0
        %v669 = vmax.f32 %v665, 0.0
        %v670 = vmax.f32 %v666, 0.0
        %v671 = vsub.f32 %v615, %v635
        %v672 = vsub.f32 %v616, %v636
        %v673 = vsub.f32 %v617, %v637
        %v674 = vsub.f32 %v618, %v638
        %v675 = vadd.f32 %v667, 1e-05
        %v676 = vadd.f32 %v668, 1e-05
        %v677 = vadd.f32 %v669, 1e-05
        %v678 = vadd.f32 %v670, 1e-05
        %v679 = vrsqrt.pop %v675
        %v680 = vrsqrt.pop %v676
        %v681 = vrsqrt.pop %v677
        %v682 = vrsqrt.pop %v678
        %v683 = vmul.f32 %v671, %v679
        %v684 = vmul.f32 %v672, %v680
        %v685 = vmul.f32 %v673, %v681
        %v686 = vmul.f32 %v674, %v682
        %v688 = vlaneseq
        %v689 = vshrl.u32 %v688, 7
        %v690 = vsub.s32 0, %v689
        %v691 = vrot.slane %v619, %v690
        %v693 = vmul.f32 %v683, %v691
        %v694 = vmul.f32 %v684, %v691
        %v695 = vmul.f32 %v685, %v691
        %v696 = vmul.f32 %v686, %v691
        %v698 = vlaneseq
        %v699 = vshrl.u32 %v698, 7
        %v700 = vsub.s32 0, %v699
        %v701 = vrot.slane %v620, %v700
        %v703 = vadd.f32 %v693, %v701
        %v704 = vadd.f32 %v694, %v701
        %v705 = vadd.f32 %v695, %v701
        %v706 = vadd.f32 %v696, %v701
        %v707 = vld [vmem:[#allocation8] sm:$0xff]
        %v708 = vld [vmem:[#allocation8 + $0x8] sm:$0xff]
        %v709 = vld [vmem:[#allocation8 + $0x10] sm:$0xff]
        %v710 = vld [vmem:[#allocation8 + $0x18] sm:$0xff]
        %v711 = vld [vmem:[#allocation8 + $0x20] sm:$0xff]
        %v712 = vld [vmem:[#allocation8 + $0x28] sm:$0xff]
        %v713 = vld [vmem:[#allocation8 + $0x30] sm:$0xff]
        %v714 = vld [vmem:[#allocation8 + $0x38] sm:$0xff]
        %v715 = vld [vmem:[#allocation8 + $0x40] sm:$0xff]
        %v716 = vld [vmem:[#allocation8 + $0x48] sm:$0xff]
        %v717 = vld [vmem:[#allocation8 + $0x50] sm:$0xff]
        %v718 = vld [vmem:[#allocation8 + $0x58] sm:$0xff]
        %v719 = vld [vmem:[#allocation10] sm:$0x1]
        %vm724 = vcmask 1043456
        %v725 = vrot.slane %v703, 4
        %v726 = vrot.slane %v704, 4
        %v727 = vsel %vm724, %v725, %v726
        %v728 = vrot.slane %v705, 4
        %v729 = vsel %vm724, %v726, %v728
        %v730 = vrot.slane %v706, 4
        %v731 = vsel %vm724, %v728, %v730
        %v736 = vsel %vm724, 0.0, %v725
        %v738 = vsel %vm724, %v730, 0.0
        %739 = vrot.lane.b32.xlu0 %v703, 32
        %v740 = vpop.permute.xlu0 %739
        %741 = vrot.lane.b32.xlu0 %v704, 32
        %v742 = vpop.permute.xlu0 %741
        %743 = vrot.lane.b32.xlu0 %v705, 32
        %v744 = vpop.permute.xlu0 %743
        %745 = vrot.lane.b32.xlu0 %v706, 32
        %v746 = vpop.permute.xlu0 %745
        %752 = vrot.lane.b32.xlu0 %v727, 64
        %v753 = vpop.permute.xlu0 %752
        %754 = vrot.lane.b32.xlu0 %v729, 64
        %v755 = vpop.permute.xlu0 %754
        %756 = vrot.lane.b32.xlu0 %v731, 64
        %v757 = vpop.permute.xlu0 %756
        %758 = vrot.lane.b32.xlu0 %v738, 64
        %v759 = vpop.permute.xlu0 %758
        %v764 = vsel %vm621, %v736, %v740
        %v765 = vsel %vm621, %v727, %v742
        %v766 = vsel %vm621, %v729, %v744
        %v767 = vsel %vm621, %v731, %v746
        %vm768 = vcmask 523264
        %v769 = vsel %vm768, %v764, %v753
        %v770 = vsel %vm768, %v765, %v755
        %v771 = vsel %vm768, %v766, %v757
        %v772 = vsel %vm768, %v767, %v759
        %v774 = vlaneseq
        %v775 = vshrl.u32 %v774, 7
        %v776 = vsub.s32 0, %v775
        %v777 = vrot.slane %v719, %v776
        %vm779 = vcmask 785408
        %v781 = vsel %vm779, %v769, 0
        %v784 = vsel %vm779, %v770, 0
        %v787 = vsel %vm779, %v771, 0
        %v790 = vsel %vm779, %v772, 0
        %792 = vmatprep.subr.mxu0 0.0
        %793 = vmatpush1.msra.mxu0 %v707
        %794 = vmatprep.subr.mxu0 0.0
        %795 = vmatpush1.msra.mxu0 %v708
        %796 = vmatprep.subr.mxu0 0.0
        %797 = vmatpush1.msra.mxu0 %v709
        %798 = vmatprep.subr.mxu0 0.0
        %799 = vmatpush1.msra.mxu0 %v710
        %800 = vmatprep.subr.mxu0 0.0
        %801 = vmatpush1.msra.mxu0 %v711
        %802 = vmatprep.subr.mxu0 0.0
        %803 = vmatpush1.msra.mxu0 %v712
        %804 = vmatprep.subr.mxu0 0.0
        %805 = vmatpush1.msra.mxu0 %v713
        %806 = vmatprep.subr.mxu0 0.0
        %807 = vmatpush1.msra.mxu0 %v714
        %808 = vmatprep.subr.mxu0 0.0
        %809 = vmatpush1.msra.mxu0 %v715
        %810 = vmatprep.subr.mxu0 0.0
        %811 = vmatpush1.msra.mxu0 %v716
        %812 = vmatprep.subr.mxu0 0.0
        %813 = vmatpush1.msra.mxu0 %v717
        %814 = vmatprep.subr.mxu0 0.0
        %815 = vmatpush1.msra.mxu0 %v718
        %816 = vmatprep.subr.mxu0 0.0
        %817 = vmatpush1.msra.mxu0 0.0
        %818 = vmatprep.subr.mxu0 0.0
        %819 = vmatpush1.msra.mxu0 0.0
        %820 = vmatprep.subr.mxu0 0.0
        %821 = vmatpush1.msra.mxu0 0.0
        %822 = vmatprep.subr.mxu0 0.0
        %823 = vmatpush1.msra.mxu0 0.0
        %824 = vmatprep.subr.mxu0 0.0
        %825 = vmatpush1.msra.mxu0 0.0
        %826 = vmatprep.subr.mxu0 0.0
        %827 = vmatpush1.msra.mxu0 0.0
        %828 = vmatprep.subr.mxu0 0.0
        %829 = vmatpush1.msra.mxu0 0.0
        %830 = vmatprep.subr.mxu0 0.0
        %831 = vmatpush1.msra.mxu0 0.0
        %832 = vmatprep.subr.mxu0 0.0
        %833 = vmatpush1.msra.mxu0 0.0
        %834 = vmatprep.subr.mxu0 0.0
        %835 = vmatpush1.msra.mxu0 0.0
        %836 = vmatprep.subr.mxu0 0.0
        %837 = vmatpush1.msra.mxu0 0.0
        %838 = vmatprep.subr.mxu0 0.0
        %839 = vmatpush1.msra.mxu0 0.0
        %840 = vmatprep.subr.mxu0 0.0
        %841 = vmatpush1.msra.mxu0 0.0
        %842 = vmatprep.subr.mxu0 0.0
        %843 = vmatpush1.msra.mxu0 0.0
        %844 = vmatprep.subr.mxu0 0.0
        %845 = vmatpush1.msra.mxu0 0.0
        %846 = vmatprep.subr.mxu0 0.0
        %847 = vmatpush1.msra.mxu0 0.0
        %848 = vmatprep.subr.mxu0 0.0
        %849 = vmatpush1.msra.mxu0 0.0
        %850 = vmatprep.subr.mxu0 0.0
        %851 = vmatpush1.msra.mxu0 0.0
        %852 = vmatprep.subr.mxu0 0.0
        %853 = vmatpush1.msra.mxu0 0.0
        %854 = vmatprep.subr.mxu0 0.0
        %855 = vmatpush1.msra.mxu0 0.0
        %856 = vmatprep.mubr.f32.mxu0 0.0
        %857 = vmatmul.mubr.f32.gmra.mrb[0].mxu0 %v781
        %v858 = vpop.f32.mrb[0].mxu0
        %v859 = vadd.f32 %v777, %v858
        %v860 = vpop.f32.mrb[0].mxu0
        %861 = vmatprep.mubr.f32.mxu0 0.0
        %862 = vmatmul.mubr.f32.gmra.mrb[0].mxu0 %v784
        %v863 = vpop.f32.mrb[0].mxu0
        %v864 = vadd.f32 %v777, %v863
        %v865 = vpop.f32.mrb[0].mxu0
        %866 = vmatprep.mubr.f32.mxu0 0.0
        %867 = vmatmul.mubr.f32.gmra.mrb[0].mxu0 %v787
        %v868 = vpop.f32.mrb[0].mxu0
        %v869 = vadd.f32 %v777, %v868
        %v870 = vpop.f32.mrb[0].mxu0
        %871 = vmatprep.mubr.f32.mxu0 0.0
        %872 = vmatmul.mubr.f32.gmra.mrb[0].mxu0 %v790
        %v873 = vpop.f32.mrb[0].mxu0
        %v874 = vadd.f32 %v777, %v873
        %v875 = vpop.f32.mrb[0].mxu0
        %876 = vdwg.mxu0
        %v877 = vmax.f32 %v859, 0.0
        %v878 = vmax.f32 %v864, 0.0
        %v879 = vmax.f32 %v869, 0.0
        %v880 = vmax.f32 %v874, 0.0
        %v881 = vld [vmem:[#allocation11] sm:$0x1]
        %v882 = vld [vmem:[#allocation13] sm:$0x1]
        %v883 = vsel %vm621, %v877, 0.0
        %884 = vadd.xlane.f32.xlu0 %v883
        %v885 = vpop.xlane.xlu0 %884
        %v886 = vsel %vm621, %v878, 0.0
        %887 = vadd.xlane.f32.xlu0 %v886
        %v888 = vpop.xlane.xlu0 %887
        %v889 = vsel %vm621, %v879, 0.0
        %890 = vadd.xlane.f32.xlu0 %v889
        %v891 = vpop.xlane.xlu0 %890
        %v892 = vsel %vm621, %v880, 0.0
        %893 = vadd.xlane.f32.xlu0 %v892
        %v894 = vpop.xlane.xlu0 %893
        %v895 = vmul.f32 %v885, %v634
        %v896 = vmul.f32 %v888, %v634
        %v897 = vmul.f32 %v891, %v634
        %v898 = vmul.f32 %v894, %v634
        %v899 = vmul.f32 %v877, %v877
        %v900 = vmul.f32 %v878, %v878
        %v901 = vmul.f32 %v879, %v879
        %v902 = vmul.f32 %v880, %v880
        %v903 = vsel %vm621, %v899, 0.0
        %904 = vadd.xlane.f32.xlu0 %v903
        %v905 = vpop.xlane.xlu0 %904
        %v906 = vsel %vm621, %v900, 0.0
        %907 = vadd.xlane.f32.xlu0 %v906
        %v908 = vpop.xlane.xlu0 %907
        %v909 = vsel %vm621, %v901, 0.0
        %910 = vadd.xlane.f32.xlu0 %v909
        %v911 = vpop.xlane.xlu0 %910
        %v912 = vsel %vm621, %v902, 0.0
        %913 = vadd.xlane.f32.xlu0 %v912
        %v914 = vpop.xlane.xlu0 %913
        %v915 = vmul.f32 %v905, %v634
        %v916 = vmul.f32 %v908, %v634
        %v917 = vmul.f32 %v911, %v634
        %v918 = vmul.f32 %v914, %v634
        %v919 = vmul.f32 %v895, %v895
        %v920 = vmul.f32 %v896, %v896
        %v921 = vmul.f32 %v897, %v897
        %v922 = vmul.f32 %v898, %v898
        %v923 = vsub.f32 %v915, %v919
        %v924 = vsub.f32 %v916, %v920
        %v925 = vsub.f32 %v917, %v921
        %v926 = vsub.f32 %v918, %v922
        %v927 = vmax.f32 %v923, 0.0
        %v928 = vmax.f32 %v924, 0.0
        %v929 = vmax.f32 %v925, 0.0
        %v930 = vmax.f32 %v926, 0.0
        %v931 = vsub.f32 %v877, %v895
        %v932 = vsub.f32 %v878, %v896
        %v933 = vsub.f32 %v879, %v897
        %v934 = vsub.f32 %v880, %v898
        %v935 = vadd.f32 %v927, 1e-05
        %v936 = vadd.f32 %v928, 1e-05
        %v937 = vadd.f32 %v929, 1e-05
        %v938 = vadd.f32 %v930, 1e-05
        %v939 = vrsqrt.pop %v935
        %v940 = vrsqrt.pop %v936
        %v941 = vrsqrt.pop %v937
        %v942 = vrsqrt.pop %v938
        %v943 = vmul.f32 %v931, %v939
        %v944 = vmul.f32 %v932, %v940
        %v945 = vmul.f32 %v933, %v941
        %v946 = vmul.f32 %v934, %v942
        %v948 = vlaneseq
        %v949 = vshrl.u32 %v948, 7
        %v950 = vsub.s32 0, %v949
        %v951 = vrot.slane %v881, %v950
        %v953 = vmul.f32 %v943, %v951
        %v954 = vmul.f32 %v944, %v951
        %v955 = vmul.f32 %v945, %v951
        %v956 = vmul.f32 %v946, %v951
        %v958 = vlaneseq
        %v959 = vshrl.u32 %v958, 7
        %v960 = vsub.s32 0, %v959
        %v961 = vrot.slane %v882, %v960
        %v963 = vadd.f32 %v953, %v961
        %v964 = vadd.f32 %v954, %v961
        %v965 = vadd.f32 %v955, %v961
        %v966 = vadd.f32 %v956, %v961
        %v967 = vld [vmem:[#allocation14] sm:$0xff]
        %v968 = vld [vmem:[#allocation14 + $0x8] sm:$0xff]
        %v969 = vld [vmem:[#allocation14 + $0x10] sm:$0xff]
        %v970 = vld [vmem:[#allocation14 + $0x18] sm:$0xff]
        %v971 = vld [vmem:[#allocation14 + $0x20] sm:$0xff]
        %v972 = vld [vmem:[#allocation14 + $0x28] sm:$0xff]
        %v973 = vld [vmem:[#allocation14 + $0x30] sm:$0xff]
        %v974 = vld [vmem:[#allocation14 + $0x38] sm:$0xff]
        %v975 = vld [vmem:[#allocation14 + $0x40] sm:$0xff]
        %v976 = vld [vmem:[#allocation14 + $0x48] sm:$0xff]
        %v977 = vld [vmem:[#allocation14 + $0x50] sm:$0xff]
        %v978 = vld [vmem:[#allocation14 + $0x58] sm:$0xff]
        %v979 = vld [vmem:[#allocation16] sm:$0x1]
        %v984 = vrot.slane %v963, 4
        %v985 = vrot.slane %v964, 4
        %v986 = vsel %vm724, %v984, %v985
        %v987 = vrot.slane %v965, 4
        %v988 = vsel %vm724, %v985, %v987
        %v989 = vrot.slane %v966, 4
        %v990 = vsel %vm724, %v987, %v989
        %v995 = vsel %vm724, 0.0, %v984
        %v997 = vsel %vm724, %v989, 0.0
        %998 = vrot.lane.b32.xlu0 %v963, 32
        %v999 = vpop.permute.xlu0 %998
        %1000 = vrot.lane.b32.xlu0 %v964, 32
        %v1001 = vpop.permute.xlu0 %1000
        %1002 = vrot.lane.b32.xlu0 %v965, 32
        %v1003 = vpop.permute.xlu0 %1002
        %1004 = vrot.lane.b32.xlu0 %v966, 32
        %v1005 = vpop.permute.xlu0 %1004
        %1011 = vrot.lane.b32.xlu0 %v986, 64
        %v1012 = vpop.permute.xlu0 %1011
        %1013 = vrot.lane.b32.xlu0 %v988, 64
        %v1014 = vpop.permute.xlu0 %1013
        %1015 = vrot.lane.b32.xlu0 %v990, 64
        %v1016 = vpop.permute.xlu0 %1015
        %1017 = vrot.lane.b32.xlu0 %v997, 64
        %v1018 = vpop.permute.xlu0 %1017
        %v1023 = vsel %vm621, %v995, %v999
        %v1024 = vsel %vm621, %v986, %v1001
        %v1025 = vsel %vm621, %v988, %v1003
        %v1026 = vsel %vm621, %v990, %v1005
        %v1027 = vsel %vm768, %v1023, %v1012
        %v1028 = vsel %vm768, %v1024, %v1014
        %v1029 = vsel %vm768, %v1025, %v1016
        %v1030 = vsel %vm768, %v1026, %v1018
        %v1032 = vlaneseq
        %v1033 = vshrl.u32 %v1032, 7
        %v1034 = vsub.s32 0, %v1033
        %v1035 = vrot.slane %v979, %v1034
        %v1038 = vsel %vm779, %v1027, 0
        %v1041 = vsel %vm779, %v1028, 0
        %v1044 = vsel %vm779, %v1029, 0
        %v1047 = vsel %vm779, %v1030, 0
        %1049 = vmatprep.subr.mxu0 0.0
        %1050 = vmatpush1.msra.mxu0 %v967
        %1051 = vmatprep.subr.mxu0 0.0
        %1052 = vmatpush1.msra.mxu0 %v968
        %1053 = vmatprep.subr.mxu0 0.0
        %1054 = vmatpush1.msra.mxu0 %v969
        %1055 = vmatprep.subr.mxu0 0.0
        %1056 = vmatpush1.msra.mxu0 %v970
        %1057 = vmatprep.subr.mxu0 0.0
        %1058 = vmatpush1.msra.mxu0 %v971
        %1059 = vmatprep.subr.mxu0 0.0
        %1060 = vmatpush1.msra.mxu0 %v972
        %1061 = vmatprep.subr.mxu0 0.0
        %1062 = vmatpush1.msra.mxu0 %v973
        %1063 = vmatprep.subr.mxu0 0.0
        %1064 = vmatpush1.msra.mxu0 %v974
        %1065 = vmatprep.subr.mxu0 0.0
        %1066 = vmatpush1.msra.mxu0 %v975
        %1067 = vmatprep.subr.mxu0 0.0
        %1068 = vmatpush1.msra.mxu0 %v976
        %1069 = vmatprep.subr.mxu0 0.0
        %1070 = vmatpush1.msra.mxu0 %v977
        %1071 = vmatprep.subr.mxu0 0.0
        %1072 = vmatpush1.msra.mxu0 %v978
        %1073 = vmatprep.subr.mxu0 0.0
        %1074 = vmatpush1.msra.mxu0 0.0
        %1075 = vmatprep.subr.mxu0 0.0
        %1076 = vmatpush1.msra.mxu0 0.0
        %1077 = vmatprep.subr.mxu0 0.0
        %1078 = vmatpush1.msra.mxu0 0.0
        %1079 = vmatprep.subr.mxu0 0.0
        %1080 = vmatpush1.msra.mxu0 0.0
        %1081 = vmatprep.subr.mxu0 0.0
        %1082 = vmatpush1.msra.mxu0 0.0
        %1083 = vmatprep.subr.mxu0 0.0
        %1084 = vmatpush1.msra.mxu0 0.0
        %1085 = vmatprep.subr.mxu0 0.0
        %1086 = vmatpush1.msra.mxu0 0.0
        %1087 = vmatprep.subr.mxu0 0.0
        %1088 = vmatpush1.msra.mxu0 0.0
        %1089 = vmatprep.subr.mxu0 0.0
        %1090 = vmatpush1.msra.mxu0 0.0
        %1091 = vmatprep.subr.mxu0 0.0
        %1092 = vmatpush1.msra.mxu0 0.0
        %1093 = vmatprep.subr.mxu0 0.0
        %1094 = vmatpush1.msra.mxu0 0.0
        %1095 = vmatprep.subr.mxu0 0.0
        %1096 = vmatpush1.msra.mxu0 0.0
        %1097 = vmatprep.subr.mxu0 0.0
        %1098 = vmatpush1.msra.mxu0 0.0
        %1099 = vmatprep.subr.mxu0 0.0
        %1100 = vmatpush1.msra.mxu0 0.0
        %1101 = vmatprep.subr.mxu0 0.0
        %1102 = vmatpush1.msra.mxu0 0.0
        %1103 = vmatprep.subr.mxu0 0.0
        %1104 = vmatpush1.msra.mxu0 0.0
        %1105 = vmatprep.subr.mxu0 0.0
        %1106 = vmatpush1.msra.mxu0 0.0
        %1107 = vmatprep.subr.mxu0 0.0
        %1108 = vmatpush1.msra.mxu0 0.0
        %1109 = vmatprep.subr.mxu0 0.0
        %1110 = vmatpush1.msra.mxu0 0.0
        %1111 = vmatprep.subr.mxu0 0.0
        %1112 = vmatpush1.msra.mxu0 0.0
        %1113 = vmatprep.mubr.f32.mxu0 0.0
        %1114 = vmatmul.mubr.f32.gmra.mrb[0].mxu0 %v1038
        %v1115 = vpop.f32.mrb[0].mxu0
        %v1116 = vadd.f32 %v1035, %v1115
        %v1117 = vpop.f32.mrb[0].mxu0
        %1118 = vmatprep.mubr.f32.mxu0 0.0
        %1119 = vmatmul.mubr.f32.gmra.mrb[0].mxu0 %v1041
        %v1120 = vpop.f32.mrb[0].mxu0
        %v1121 = vadd.f32 %v1035, %v1120
        %v1122 = vpop.f32.mrb[0].mxu0
        %1123 = vmatprep.mubr.f32.mxu0 0.0
        %1124 = vmatmul.mubr.f32.gmra.mrb[0].mxu0 %v1044
        %v1125 = vpop.f32.mrb[0].mxu0
        %v1126 = vadd.f32 %v1035, %v1125
        %v1127 = vpop.f32.mrb[0].mxu0
        %1128 = vmatprep.mubr.f32.mxu0 0.0
        %1129 = vmatmul.mubr.f32.gmra.mrb[0].mxu0 %v1047
        %v1130 = vpop.f32.mrb[0].mxu0
        %v1131 = vadd.f32 %v1035, %v1130
        %v1132 = vpop.f32.mrb[0].mxu0
        %1133 = vdwg.mxu0
        %v1134 = vmax.f32 %v1116, 0.0
        %v1135 = vmax.f32 %v1121, 0.0
        %v1136 = vmax.f32 %v1126, 0.0
        %v1137 = vmax.f32 %v1131, 0.0
        %v1138 = vld [vmem:[#allocation17] sm:$0x1]
        %v1139 = vld [vmem:[#allocation19] sm:$0x1]
        %v1140 = vsel %vm621, %v1134, 0.0
        %1141 = vadd.xlane.f32.xlu0 %v1140
        %v1142 = vpop.xlane.xlu0 %1141
        %v1143 = vsel %vm621, %v1135, 0.0
        %1144 = vadd.xlane.f32.xlu0 %v1143
        %v1145 = vpop.xlane.xlu0 %1144
        %v1146 = vsel %vm621, %v1136, 0.0
        %1147 = vadd.xlane.f32.xlu0 %v1146
        %v1148 = vpop.xlane.xlu0 %1147
        %v1149 = vsel %vm621, %v1137, 0.0
        %1150 = vadd.xlane.f32.xlu0 %v1149
        %v1151 = vpop.xlane.xlu0 %1150
        %v1152 = vmul.f32 %v1142, %v634
        %v1153 = vmul.f32 %v1145, %v634
        %v1154 = vmul.f32 %v1148, %v634
        %v1155 = vmul.f32 %v1151, %v634
        %v1156 = vmul.f32 %v1134, %v1134
        %v1157 = vmul.f32 %v1135, %v1135
        %v1158 = vmul.f32 %v1136, %v1136
        %v1159 = vmul.f32 %v1137, %v1137
        %v1160 = vsel %vm621, %v1156, 0.0
        %1161 = vadd.xlane.f32.xlu0 %v1160
        %v1162 = vpop.xlane.xlu0 %1161
        %v1163 = vsel %vm621, %v1157, 0.0
        %1164 = vadd.xlane.f32.xlu0 %v1163
        %v1165 = vpop.xlane.xlu0 %1164
        %v1166 = vsel %vm621, %v1158, 0.0
        %1167 = vadd.xlane.f32.xlu0 %v1166
        %v1168 = vpop.xlane.xlu0 %1167
        %v1169 = vsel %vm621, %v1159, 0.0
        %1170 = vadd.xlane.f32.xlu0 %v1169
        %v1171 = vpop.xlane.xlu0 %1170
        %v1172 = vmul.f32 %v1162, %v634
        %v1173 = vmul.f32 %v1165, %v634
        %v1174 = vmul.f32 %v1168, %v634
        %v1175 = vmul.f32 %v1171, %v634
        %v1176 = vmul.f32 %v1152, %v1152
        %v1177 = vmul.f32 %v1153, %v1153
        %v1178 = vmul.f32 %v1154, %v1154
        %v1179 = vmul.f32 %v1155, %v1155
        %v1180 = vsub.f32 %v1172, %v1176
        %v1181 = vsub.f32 %v1173, %v1177
        %v1182 = vsub.f32 %v1174, %v1178
        %v1183 = vsub.f32 %v1175, %v1179
        %v1184 = vmax.f32 %v1180, 0.0
        %v1185 = vmax.f32 %v1181, 0.0
        %v1186 = vmax.f32 %v1182, 0.0
        %v1187 = vmax.f32 %v1183, 0.0
        %v1188 = vsub.f32 %v1134, %v1152
        %v1189 = vsub.f32 %v1135, %v1153
        %v1190 = vsub.f32 %v1136, %v1154
        %v1191 = vsub.f32 %v1137, %v1155
        %v1192 = vadd.f32 %v1184, 1e-05
        %v1193 = vadd.f32 %v1185, 1e-05
        %v1194 = vadd.f32 %v1186, 1e-05
        %v1195 = vadd.f32 %v1187, 1e-05
        %v1196 = vrsqrt.pop %v1192
        %v1197 = vrsqrt.pop %v1193
        %v1198 = vrsqrt.pop %v1194
        %v1199 = vrsqrt.pop %v1195
        %v1200 = vmul.f32 %v1188, %v1196
        %v1201 = vmul.f32 %v1189, %v1197
        %v1202 = vmul.f32 %v1190, %v1198
        %v1203 = vmul.f32 %v1191, %v1199
        %v1205 = vlaneseq
        %v1206 = vshrl.u32 %v1205, 7
        %v1207 = vsub.s32 0, %v1206
        %v1208 = vrot.slane %v1138, %v1207
        %v1210 = vmul.f32 %v1200, %v1208
        %v1211 = vmul.f32 %v1201, %v1208
        %v1212 = vmul.f32 %v1202, %v1208
        %v1213 = vmul.f32 %v1203, %v1208
        %v1215 = vlaneseq
        %v1216 = vshrl.u32 %v1215, 7
        %v1217 = vsub.s32 0, %v1216
        %v1218 = vrot.slane %v1139, %v1217
        %v1220 = vadd.f32 %v1210, %v1218
        %v1221 = vadd.f32 %v1211, %v1218
        %v1222 = vadd.f32 %v1212, %v1218
        %v1223 = vadd.f32 %v1213, %v1218
        %v1224 = vld [vmem:[#allocation20] sm:$0xff]
        %v1225 = vld [vmem:[#allocation20 + $0x8] sm:$0xff]
        %v1226 = vld [vmem:[#allocation20 + $0x10] sm:$0xff]
        %v1227 = vld [vmem:[#allocation20 + $0x18] sm:$0xff]
        %v1228 = vld [vmem:[#allocation20 + $0x20] sm:$0xff]
        %v1229 = vld [vmem:[#allocation20 + $0x28] sm:$0xff]
        %v1230 = vld [vmem:[#allocation20 + $0x30] sm:$0xff]
        %v1231 = vld [vmem:[#allocation20 + $0x38] sm:$0xff]
        %v1232 = vld [vmem:[#allocation20 + $0x40] sm:$0xff]
        %v1233 = vld [vmem:[#allocation20 + $0x48] sm:$0xff]
        %v1234 = vld [vmem:[#allocation20 + $0x50] sm:$0xff]
        %v1235 = vld [vmem:[#allocation20 + $0x58] sm:$0xff]
        %v1236 = vld [vmem:[#allocation22] sm:$0x1]
        %v1241 = vrot.slane %v1220, 4
        %v1242 = vrot.slane %v1221, 4
        %v1243 = vsel %vm724, %v1241, %v1242
        %v1244 = vrot.slane %v1222, 4
        %v1245 = vsel %vm724, %v1242, %v1244
        %v1246 = vrot.slane %v1223, 4
        %v1247 = vsel %vm724, %v1244, %v1246
        %v1252 = vsel %vm724, 0.0, %v1241
        %v1254 = vsel %vm724, %v1246, 0.0
        %1255 = vrot.lane.b32.xlu0 %v1220, 32
        %v1256 = vpop.permute.xlu0 %1255
        %1257 = vrot.lane.b32.xlu0 %v1221, 32
        %v1258 = vpop.permute.xlu0 %1257
        %1259 = vrot.lane.b32.xlu0 %v1222, 32
        %v1260 = vpop.permute.xlu0 %1259
        %1261 = vrot.lane.b32.xlu0 %v1223, 32
        %v1262 = vpop.permute.xlu0 %1261
        %1268 = vrot.lane.b32.xlu0 %v1243, 64
        %v1269 = vpop.permute.xlu0 %1268
        %1270 = vrot.lane.b32.xlu0 %v1245, 64
        %v1271 = vpop.permute.xlu0 %1270
        %1272 = vrot.lane.b32.xlu0 %v1247, 64
        %v1273 = vpop.permute.xlu0 %1272
        %1274 = vrot.lane.b32.xlu0 %v1254, 64
        %v1275 = vpop.permute.xlu0 %1274
        %v1280 = vsel %vm621, %v1252, %v1256
        %v1281 = vsel %vm621, %v1243, %v1258
        %v1282 = vsel %vm621, %v1245, %v1260
        %v1283 = vsel %vm621, %v1247, %v1262
        %v1284 = vsel %vm768, %v1280, %v1269
        %v1285 = vsel %vm768, %v1281, %v1271
        %v1286 = vsel %vm768, %v1282, %v1273
        %v1287 = vsel %vm768, %v1283, %v1275
        %v1289 = vlaneseq
        %v1290 = vshrl.u32 %v1289, 7
        %v1291 = vsub.s32 0, %v1290
        %v1292 = vrot.slane %v1236, %v1291
        %v1295 = vsel %vm779, %v1284, 0
        %v1298 = vsel %vm779, %v1285, 0
        %v1301 = vsel %vm779, %v1286, 0
        %v1304 = vsel %vm779, %v1287, 0
        %1306 = vmatprep.subr.mxu0 0.0
        %1307 = vmatpush1.msra.mxu0 %v1224
        %1308 = vmatprep.subr.mxu0 0.0
        %1309 = vmatpush1.msra.mxu0 %v1225
        %1310 = vmatprep.subr.mxu0 0.0
        %1311 = vmatpush1.msra.mxu0 %v1226
        %1312 = vmatprep.subr.mxu0 0.0
        %1313 = vmatpush1.msra.mxu0 %v1227
        %1314 = vmatprep.subr.mxu0 0.0
        %1315 = vmatpush1.msra.mxu0 %v1228
        %1316 = vmatprep.subr.mxu0 0.0
        %1317 = vmatpush1.msra.mxu0 %v1229
        %1318 = vmatprep.subr.mxu0 0.0
        %1319 = vmatpush1.msra.mxu0 %v1230
        %1320 = vmatprep.subr.mxu0 0.0
        %1321 = vmatpush1.msra.mxu0 %v1231
        %1322 = vmatprep.subr.mxu0 0.0
        %1323 = vmatpush1.msra.mxu0 %v1232
        %1324 = vmatprep.subr.mxu0 0.0
        %1325 = vmatpush1.msra.mxu0 %v1233
        %1326 = vmatprep.subr.mxu0 0.0
        %1327 = vmatpush1.msra.mxu0 %v1234
        %1328 = vmatprep.subr.mxu0 0.0
        %1329 = vmatpush1.msra.mxu0 %v1235
        %1330 = vmatprep.subr.mxu0 0.0
        %1331 = vmatpush1.msra.mxu0 0.0
        %1332 = vmatprep.subr.mxu0 0.0
        %1333 = vmatpush1.msra.mxu0 0.0
        %1334 = vmatprep.subr.mxu0 0.0
        %1335 = vmatpush1.msra.mxu0 0.0
        %1336 = vmatprep.subr.mxu0 0.0
        %1337 = vmatpush1.msra.mxu0 0.0
        %1338 = vmatprep.subr.mxu0 0.0
        %1339 = vmatpush1.msra.mxu0 0.0
        %1340 = vmatprep.subr.mxu0 0.0
        %1341 = vmatpush1.msra.mxu0 0.0
        %1342 = vmatprep.subr.mxu0 0.0
        %1343 = vmatpush1.msra.mxu0 0.0
        %1344 = vmatprep.subr.mxu0 0.0
        %1345 = vmatpush1.msra.mxu0 0.0
        %1346 = vmatprep.subr.mxu0 0.0
        %1347 = vmatpush1.msra.mxu0 0.0
        %1348 = vmatprep.subr.mxu0 0.0
        %1349 = vmatpush1.msra.mxu0 0.0
        %1350 = vmatprep.subr.mxu0 0.0
        %1351 = vmatpush1.msra.mxu0 0.0
        %1352 = vmatprep.subr.mxu0 0.0
        %1353 = vmatpush1.msra.mxu0 0.0
        %1354 = vmatprep.subr.mxu0 0.0
        %1355 = vmatpush1.msra.mxu0 0.0
        %1356 = vmatprep.subr.mxu0 0.0
        %1357 = vmatpush1.msra.mxu0 0.0
        %1358 = vmatprep.subr.mxu0 0.0
        %1359 = vmatpush1.msra.mxu0 0.0
        %1360 = vmatprep.subr.mxu0 0.0
        %1361 = vmatpush1.msra.mxu0 0.0
        %1362 = vmatprep.subr.mxu0 0.0
        %1363 = vmatpush1.msra.mxu0 0.0
        %1364 = vmatprep.subr.mxu0 0.0
        %1365 = vmatpush1.msra.mxu0 0.0
        %1366 = vmatprep.subr.mxu0 0.0
        %1367 = vmatpush1.msra.mxu0 0.0
        %1368 = vmatprep.subr.mxu0 0.0
        %1369 = vmatpush1.msra.mxu0 0.0
        %1370 = vmatprep.mubr.f32.mxu0 0.0
        %1371 = vmatmul.mubr.f32.gmra.mrb[0].mxu0 %v1295
        %v1372 = vpop.f32.mrb[0].mxu0
        %v1373 = vadd.f32 %v1292, %v1372
        %v1374 = vpop.f32.mrb[0].mxu0
        %1375 = vmatprep.mubr.f32.mxu0 0.0
        %1376 = vmatmul.mubr.f32.gmra.mrb[0].mxu0 %v1298
        %v1377 = vpop.f32.mrb[0].mxu0
        %v1378 = vadd.f32 %v1292, %v1377
        %v1379 = vpop.f32.mrb[0].mxu0
        %1380 = vmatprep.mubr.f32.mxu0 0.0
        %1381 = vmatmul.mubr.f32.gmra.mrb[0].mxu0 %v1301
        %v1382 = vpop.f32.mrb[0].mxu0
        %v1383 = vadd.f32 %v1292, %v1382
        %v1384 = vpop.f32.mrb[0].mxu0
        %1385 = vmatprep.mubr.f32.mxu0 0.0
        %1386 = vmatmul.mubr.f32.gmra.mrb[0].mxu0 %v1304
        %v1387 = vpop.f32.mrb[0].mxu0
        %v1388 = vadd.f32 %v1292, %v1387
        %v1389 = vpop.f32.mrb[0].mxu0
        %1390 = vdwg.mxu0
        %1391 = vst.msk [vmem:[%s614] sm:$0xff] %vm621, %v1373
        %1392 = vst.msk [vmem:[%s614 + $0x8] sm:$0xff] %vm621, %v1378
        %1393 = vst.msk [vmem:[%s614 + $0x10] sm:$0xff] %vm621, %v1383
        %1394 = vst.msk [vmem:[%s614 + $0x18] sm:$0xff] %vm621, %v1388
        %s1395 = sand.u32 %s322, 1
        %s1396 = scalar_lea.sflag [#allocation4], %s1395
        %s1397 = sand.u32 %s322, 1
        %s1398 = smul.addr %s1397, 32
        %s1399 = scalar_lea.vmem [#allocation23], %s1398
        // Predicated region
        $region125: #{tpu_custom_call.1} parent=71 // pred_check
          %p1400 = pneg %p332
        $region126: #{tpu_custom_call.1} parent=71 // pred_check_branch
          %1402 = sbr.rel (%p1400) target = $region128
        $region127: #{tpu_custom_call.1} parent=71 // pred_region
          %s1404 = ssub.s32 512, 512
          %1405 = vsyncadd %s1396, %s1404
          %s1406 = smul.addr %s36, 4
          %s1407 = smul.addr %s1406, 128
          %s1408 = scalar_lea.hbm %s13, %s1407
          %s1409 = sshll.u32 %s1399, 4
          %s1410 = int_to_ptr.vmem [resolvable:$true] %s1409
          %1415 = dma.vmem_to_hbm [thread:$0]  %s1410, 512, %s1408, %s1396, 128, 128, 8
        $region128: #{tpu_custom_call.1} parent=71 // pred_fallthru
          _
      $region72: #{tpu_custom_call.1} parent=5 // pred_fallthru
        _
      %p1416 = scmp.le.s32.totalorder 2, %s31
      // Predicated region
      $region129: #{tpu_custom_call.1} parent=5 // pred_check
        %p1417 = pneg %p1416
      $region130: #{tpu_custom_call.1} parent=5 // pred_check_branch
        %1419 = sbr.rel (%p1417) target = $region132
      $region131: #{tpu_custom_call.1} parent=5 // pred_region
        %s1420 = ssub.s32 %s31, 2
        // Predicated region
        $region133: #{tpu_custom_call.1} parent=131 // pred_check
          %p1421 = pneg %p338
        $region134: #{tpu_custom_call.1} parent=131 // pred_check_branch
          %1423 = sbr.rel (%p1421) target = $region136
        $region135: #{tpu_custom_call.1} parent=131 // pred_region
          %s1424 = sand.u32 %s323, 1
          %s1425 = scalar_lea.sflag [#allocation4], %s1424
          %s1426 = sand.u32 %s323, 1
          %s1427 = smul.addr %s1426, 32
          %s1428 = scalar_lea.vmem [#allocation23], %s1427
          %1429 = dma.done %s1425, 512
        $region136: #{tpu_custom_call.1} parent=131 // pred_fallthru
          _
      $region132: #{tpu_custom_call.1} parent=5 // pred_fallthru
        _
    $region6: #{tpu_custom_call.1} parent=1 // loop_footer
      %s35 = sadd.s32 1, %s31
    $region7: #{tpu_custom_call.1} parent=1 // loop_footer_branch
      %30 = sbr.rel target = $region3
    $region8: #{tpu_custom_call.1} parent=1 // loop_exit
      _
    %1430 = vsyncpa [#allocation3], 1
    %s1431 = scalar_lea.sflag [#allocation3], 1
    %1432 = vsyncpa %s1431, 1
    %1433 = vsyncpa [#allocation6], 1
    %1434 = vsyncpa [#allocation9], 1
    %1435 = vsyncpa [#allocation12], 1
    %1436 = vsyncpa [#allocation15], 1
    %1437 = vsyncpa [#allocation18], 1
    %1438 = vsyncpa [#allocation21], 1
    %1439 = vsyncpa [#allocation4], 1
    %s1440 = scalar_lea.sflag [#allocation4], 1
    %1441 = vsyncpa %s1440, 1

</llo_original>
